<compile_context>
chip_gen: v5e
topology: v5e:2x2
jax: 0.10.0
libtpu: 0.0.40
codegen_flags: <defaults>
</compile_context>

<pallas_src>
import functools

import jax
import jax.numpy as jnp
from jax.experimental import pallas as pl
from jax.experimental.pallas import tpu as pltpu


def _round_up(x, m):
    return ((x + m - 1) // m) * m


# ---------------------------------------------------------------------------
# Kernels
# ---------------------------------------------------------------------------
def gru_recurrence_kernel(gi_ref, whh_ref, bhhn_ref, hlast_ref, h_scratch,
                          *, hidden_dim, t_chunk, batch, seq_len, unroll):
    """One grid step == one chunk of `t_chunk` timesteps.

    gi_ref:    (t_chunk*batch, 3H)  time-major gathered input projection (f32)
    whh_ref:   (H, 3H)              hidden->hidden weights (transposed), gate order [r, z, n]
    bhhn_ref:  (1, H)               n-gate half of b_hh (must stay inside the r* multiply)
    hlast_ref: (batch, H)           hidden state after the last (real) timestep
    h_scratch: (batch, H)           persistent hidden state across chunks
    """
    H = hidden_dim
    c = pl.program_id(0)

    @pl.when(c == 0)
    def _init():
        h_scratch[...] = jnp.zeros_like(h_scratch)

    def step(t, h_prev):
        row0 = pl.multiple_of(t * batch, batch)
        g = gi_ref[pl.ds(row0, batch), :]                                 # (B, 3H) f32
        gh = jnp.dot(h_prev.astype(whh_ref.dtype), whh_ref[...],
                     preferred_element_type=jnp.float32)                  # (B, 3H) f32
        r = jax.nn.sigmoid(g[:, :H] + gh[:, :H])
        z = jax.nn.sigmoid(g[:, H:2 * H] + gh[:, H:2 * H])
        n = jnp.tanh(g[:, 2 * H:] + r * (gh[:, 2 * H:] + bhhn_ref[...]))
        h_new = (1.0 - z) * n + z * h_prev
        if seq_len % t_chunk != 0:
            # Only the (zero-padded) tail of the last chunk is masked out.
            valid = (c * t_chunk + t) < seq_len
            h_new = jnp.where(valid, h_new, h_prev)
        return h_new

    # Partial unroll: the recurrence is latency-bound (tiny MXU push + 3 EUP ops with a
    # serial h dependency), so unrolling lets the scheduler overlap adjacent steps.
    h_final = jax.lax.fori_loop(0, t_chunk, step, h_scratch[...], unroll=unroll)
    h_scratch[...] = h_final
    # Write the (tiny) resident output block every chunk; last write wins.
    hlast_ref[...] = h_final.astype(hlast_ref.dtype)


def fc_kernel(h_ref, w_ref, b_ref, out_ref):
    """Final Linear on the last hidden state, tiled (parallel) over lane-dense vocab."""
    out_ref[...] = (
        jnp.dot(h_ref[...].astype(w_ref.dtype), w_ref[...],
                preferred_element_type=jnp.float32)
        + b_ref[...]).astype(out_ref.dtype)


# ---------------------------------------------------------------------------
# One-time weight preparation (fold / transpose / pad / cast)
# ---------------------------------------------------------------------------
def prepare_params(params, *, matmul_dtype=jnp.bfloat16):
    """Fold the input projection into the embedding table, pad H to a 128 multiple,
    and pre-pad/transpose/cast the hidden & FC weights. Call once, reuse per forward."""
    emb = params["embedding"]        # (V, E)
    w_ih = params["w_ih"]            # (3H, E)
    w_hh = params["w_hh"]            # (3H, H)
    b_ih = params["b_ih"]            # (3H,)
    b_hh = params["b_hh"]            # (3H,)
    fc_w = params["fc_w"]            # (V, H)
    fc_b = params["fc_b"]            # (V,)

    V, E = emb.shape
    H = w_hh.shape[1]
    Hp = _round_up(H, 128)
    assert Hp % 128 == 0

    def pad_gates(a, axis):
        # Split 3H along `axis` into [r, z, n] blocks and zero-pad each H -> Hp.
        r, z, n = jnp.split(a, 3, axis=axis)
        pad = [(0, 0)] * a.ndim
        pad[axis] = (0, Hp - H)
        return jnp.concatenate(
            [jnp.pad(r, pad), jnp.pad(z, pad), jnp.pad(n, pad)], axis=axis)

    # Fused input-projection table: gi_table[v] = emb[v] @ W_ih^T + b_ih, with the r/z
    # halves of b_hh pre-folded in (the n half must stay inside the r* multiply).
    bih_folded = jnp.concatenate([b_ih[:2 * H] + b_hh[:2 * H], b_ih[2 * H:]])
    gi_table = (emb.astype(jnp.float32) @ w_ih.T.astype(jnp.float32)
                + bih_folded.astype(jnp.float32))                       # (V, 3H) f32
    gi_table = pad_gates(gi_table, axis=1)                              # (V, 3Hp) f32

    # Hidden->hidden weights: transpose, pad h-input rows and each gate block, cast.
    whh_t = jnp.pad(w_hh.T.astype(jnp.float32), ((0, Hp - H), (0, 0)))  # (Hp, 3H)
    whh_t = pad_gates(whh_t, axis=1).astype(matmul_dtype)               # (Hp, 3Hp)
    bhh_n = jnp.pad(b_hh[2 * H:].astype(jnp.float32),
                    (0, Hp - H)).reshape(1, Hp)                         # (1, Hp) f32

    # FC weights: pre-pad to a lane-dense vocab multiple, transpose, cast — ONCE.
    v_pad = _round_up(V, 128)
    v_tile = v_pad if v_pad <= 2048 else 2048
    v_pad = _round_up(v_pad, v_tile)
    fcw_t = jnp.zeros((Hp, v_pad), matmul_dtype).at[:H, :V].set(fc_w.T.astype(matmul_dtype))
    fcb = jnp.zeros((1, v_pad), jnp.float32).at[:, :V].set(fc_b.astype(jnp.float32))

    return {"gi_table": gi_table, "whh_t": whh_t, "bhh_n": bhh_n,
            "fcw_t": fcw_t, "fcb": fcb}


# ---------------------------------------------------------------------------
# Forward
# ---------------------------------------------------------------------------
def gru_model_forward(token_ids, prepared, *, t_chunk=128,
                      vmem_limit_bytes=32 * 1024 * 1024):
    """token_ids: (B, T) int32. Returns logits (B, vocab_size).

    `vmem_limit_bytes` can be raised (e.g. 64-96 MiB) on v5e/v6e (128 MiB physical VMEM)
    to allow a bigger t_chunk at large E/H; keep it conservative for v7x (64 MiB)."""
    gi_table = prepared["gi_table"]      # (V, 3Hp) f32
    whh_t = prepared["whh_t"]            # (Hp, 3Hp)
    bhh_n = prepared["bhh_n"]            # (1, Hp)
    fcw_t = prepared["fcw_t"]            # (Hp, v_pad)
    fcb = prepared["fcb"]                # (1, v_pad)

    B, T = token_ids.shape
    V = gi_table.shape[0]
    Hp = whh_t.shape[0]
    G = whh_t.shape[1]                   # 3 * Hp
    v_pad = fcw_t.shape[1]
    v_tile = v_pad if v_pad <= 2048 else 2048
    mm_dtype = whh_t.dtype

    # Batch row tile: 8 sublanes for f32 LHS, 16 for packed bf16 LHS (avoids per-step repack).
    row_tile = 16 if jnp.dtype(mm_dtype).itemsize < 4 else 8
    b_pad = _round_up(max(B, row_tile), row_tile)

    t_chunk = max(1, min(t_chunk, T))
    n_chunks = pl.cdiv(T, t_chunk)
    t_pad = n_chunks * t_chunk

    # Pad batch (token 0, rows sliced away) and time (masked in-kernel if needed).
    ids = jnp.pad(token_ids.astype(jnp.int32), ((0, b_pad - B), (0, t_pad - T)))

    # Fused-embedding gather: gi = (emb @ W_ih^T + b)[ids], time-major.  This replaces the
    # per-call (T*B,E)x(E,3H) input-projection matmul entirely.
    # TODO(synk): the gather itself stays in plain JAX glue (no dense-tile Pallas equivalent).
    gi_flat = jnp.take(gi_table, ids.T, axis=0).reshape(t_pad * b_pad, G)   # f32

    # Partial unroll of the serial recurrence; smaller when H is big (vreg pressure).
    unroll = min(t_chunk, 4 if Hp >= 512 else 8)

    rec_kernel = functools.partial(
        gru_recurrence_kernel,
        hidden_dim=Hp, t_chunk=t_chunk, batch=b_pad, seq_len=T, unroll=unroll)

    h_last = pl.pallas_call(
        rec_kernel,
        out_shape=jax.ShapeDtypeStruct((b_pad, Hp), jnp.float32),
        grid_spec=pltpu.PrefetchScalarGridSpec(
            num_scalar_prefetch=0,
            grid=(n_chunks,),
            in_specs=[
                pl.BlockSpec((t_chunk * b_pad, G), lambda c: (c, 0)),   # gi chunk
                pl.BlockSpec((Hp, G), lambda c: (0, 0)),                # whh_t (resident)
                pl.BlockSpec((1, Hp), lambda c: (0, 0)),                # b_hh (n gate)
            ],
            out_specs=pl.BlockSpec((b_pad, Hp), lambda c: (0, 0)),
            scratch_shapes=[pltpu.VMEM((b_pad, Hp), jnp.float32)],      # hidden state
        ),
        compiler_params=pltpu.CompilerParams(
            dimension_semantics=("arbitrary",),
            vmem_limit_bytes=vmem_limit_bytes),
    )(gi_flat, whh_t, bhh_n)

    # Final FC as its own kernel, lane-dense (128-padded) vocab tiles, parallel grid.
    logits = pl.pallas_call(
        fc_kernel,
        out_shape=jax.ShapeDtypeStruct((b_pad, v_pad), jnp.float32),
        grid_spec=pltpu.PrefetchScalarGridSpec(
            num_scalar_prefetch=0,
            grid=(v_pad // v_tile,),
            in_specs=[
                pl.BlockSpec((b_pad, Hp), lambda j: (0, 0)),
                pl.BlockSpec((Hp, v_tile), lambda j: (0, j)),
                pl.BlockSpec((1, v_tile), lambda j: (0, j)),
            ],
            out_specs=pl.BlockSpec((b_pad, v_tile), lambda j: (0, j)),
        ),
        compiler_params=pltpu.CompilerParams(
            dimension_semantics=("parallel",),
            vmem_limit_bytes=vmem_limit_bytes),
    )(h_last, fcw_t, fcb)

    return logits[:B, :V]


# ---------------------------------------------------------------------------
# Init + pure-JAX reference (PyTorch nn.GRU semantics, gate order r,z,n)
# ---------------------------------------------------------------------------
def init_params(key, vocab_size, embed_dim, hidden_dim):
    ks = jax.random.split(key, 7)
    k = 1.0 / jnp.sqrt(hidden_dim)
    return {
        "embedding": jax.random.normal(ks[0], (vocab_size, embed_dim), jnp.float32),
        "w_ih": jax.random.uniform(ks[1], (3 * hidden_dim, embed_dim), jnp.float32, -k, k),
        "w_hh": jax.random.uniform(ks[2], (3 * hidden_dim, hidden_dim), jnp.float32, -k, k),
        "b_ih": jax.random.uniform(ks[3], (3 * hidden_dim,), jnp.float32, -k, k),
        "b_hh": jax.random.uniform(ks[4], (3 * hidden_dim,), jnp.float32, -k, k),
        "fc_w": jax.random.uniform(ks[5], (vocab_size, hidden_dim), jnp.float32, -k, k),
        "fc_b": jax.random.uniform(ks[6], (vocab_size,), jnp.float32, -k, k),
    }


def reference_forward(token_ids, params):
    emb = params["embedding"]
    x = jnp.take(emb, token_ids, axis=0)              # (B, T, E)
    B, T, E = x.shape
    H = params["w_hh"].shape[1]
    w_ih, w_hh = params["w_ih"], params["w_hh"]
    b_ih, b_hh = params["b_ih"], params["b_hh"]

    def step(h, x_t):
        gi = x_t @ w_ih.T + b_ih
        gh = h @ w_hh.T + b_hh
        i_r, i_z, i_n = gi[:, :H], gi[:, H:2 * H], gi[:, 2 * H:]
        h_r, h_z, h_n = gh[:, :H], gh[:, H:2 * H], gh[:, 2 * H:]
        r = jax.nn.sigmoid(i_r + h_r)
        z = jax.nn.sigmoid(i_z + h_z)
        n = jnp.tanh(i_n + r * h_n)
        return (1.0 - z) * n + z * h, None

    h0 = jnp.zeros((B, H), jnp.float32)
    h_last, _ = jax.lax.scan(step, h0, jnp.transpose(x, (1, 0, 2)))
    return h_last @ params["fc_w"].T + params["fc_b"]


if __name__ == "__main__":
    vocab_size, embed_dim, hidden_dim = 64, 64, 128
    B, T = 2, 8

    key = jax.random.PRNGKey(0)
    pkey, xkey = jax.random.split(key)
    params = init_params(pkey, vocab_size, embed_dim, hidden_dim)
    token_ids = jax.random.randint(xkey, (B, T), 0, vocab_size, dtype=jnp.int32)

    ref = reference_forward(token_ids, params)

    # Exact f32 path.
    prep_f32 = prepare_params(params, matmul_dtype=jnp.float32)
    out = jax.block_until_ready(gru_model_forward(token_ids, prep_f32))
    assert out.shape == (B, vocab_size)
    assert jnp.allclose(out, ref, rtol=1e-4, atol=1e-4), "f32 mismatch vs reference"

    # Default bf16 matmul operands (whh, fc_w, h cast) with f32 accumulation / gate math.
    prep_bf16 = prepare_params(params)                 # matmul_dtype defaults to bf16
    out_bf16 = jax.block_until_ready(gru_model_forward(token_ids, prep_bf16))
    assert jnp.allclose(out_bf16, ref, rtol=5e-2, atol=1e-1), "bf16 path diverged"

    print("KERNEL_OK")
</pallas_src>

<mosaic_0001>
module attributes {stable_mosaic.version = 11 : i64} {
  func.func @gru_recurrence_kernel(%arg0: i32, %arg1: memref<64x384xf32, #tpu.memory_space<vmem>>, %arg2: memref<128x384xf32, #tpu.memory_space<vmem>>, %arg3: memref<1x128xf32, #tpu.memory_space<vmem>>, %arg4: memref<8x128xf32, #tpu.memory_space<vmem>>, %arg5: memref<8x128xf32, #tpu.memory_space<vmem>>) attributes {dimension_semantics = [#tpu.dimension_semantics<arbitrary>], iteration_bounds = array<i64: 1>, scalar_prefetch = 0 : i64, scratch_operands = 1 : i64, tpu.core_type = #tpu.core_type<tc>, window_params = [{transform_indices = @transform_0, window_bounds = array<i64: 64, 384>}, {pipeline_mode = #tpu.pipeline_mode<synchronous>, transform_indices = @transform_1, window_bounds = array<i64: 128, 384>}, {pipeline_mode = #tpu.pipeline_mode<synchronous>, transform_indices = @transform_2, window_bounds = array<i64: 1, 128>}, {pipeline_mode = #tpu.pipeline_mode<synchronous>, transform_indices = @transform_3, window_bounds = array<i64: 8, 128>}]} {
    %c0_i32 = arith.constant 0 : i32
    %0 = arith.cmpi eq, %arg0, %c0_i32 : i32
    %1 = arith.extui %0 : i1 to i32
    %c0_i32_0 = arith.constant 0 : i32
    %2 = arith.cmpi ne, %1, %c0_i32_0 : i32
    scf.if %2 {
      %cst_86 = arith.constant 0.000000e+00 : f32
      %286 = vector.broadcast %cst_86 : f32 to vector<8x128xf32>
      %c0_87 = arith.constant 0 : index
      %c0_88 = arith.constant 0 : index
      %287 = vector.load %arg5[%c0_87, %c0_88] : memref<8x128xf32, #tpu.memory_space<vmem>>, vector<8x128xf32>
      tpu.vector_store %arg5[%c0_87, %c0_88], %286 {strides = array<i32>} : memref<8x128xf32, #tpu.memory_space<vmem>>, vector<8x128xf32>,
    } else {
    }
    %c0 = arith.constant 0 : index
    %c0_1 = arith.constant 0 : index
    %3 = vector.load %arg5[%c0, %c0_1] : memref<8x128xf32, #tpu.memory_space<vmem>>, vector<8x128xf32>
    %c0_i32_2 = arith.constant 0 : i32
    %c8_i32 = arith.constant 8 : i32
    %4 = arith.muli %c0_i32_2, %c8_i32 : i32
    %5 = tpu.assume_multiple %4, 8 : i32
    %6 = arith.index_cast %5 : i32 to index
    %c0_3 = arith.constant 0 : index
    %7 = vector.load %arg1[%6, %c0_3] : memref<64x384xf32, #tpu.memory_space<vmem>>, vector<8x384xf32>
    %c0_4 = arith.constant 0 : index
    %c0_5 = arith.constant 0 : index
    %8 = vector.load %arg2[%c0_4, %c0_5] : memref<128x384xf32, #tpu.memory_space<vmem>>, vector<128x384xf32>
    %cst = arith.constant dense<0.000000e+00> : vector<8x384xf32>
    %9 = tpu.matmul %3, %8, %cst {dimension_numbers = #tpu.dot_dimension_numbers<[1], [0], [0], [1], [0, 0, 1, 1], [], []>} : vector<8x128xf32>, vector<128x384xf32>, vector<8x384xf32> -> vector<8x384xf32>
    %10 = vector.extract_strided_slice %7 {offsets = [0, 0], sizes = [8, 128], strides = [1, 1]} : vector<8x384xf32> to vector<8x128xf32>
    %11 = vector.extract_strided_slice %9 {offsets = [0, 0], sizes = [8, 128], strides = [1, 1]} : vector<8x384xf32> to vector<8x128xf32>
    %12 = arith.addf %10, %11 : vector<8x128xf32>
    %13 = arith.negf %12 : vector<8x128xf32>
    %14 = math.exp %13 : vector<8x128xf32>
    %cst_6 = arith.constant 1.000000e+00 : f32
    %15 = vector.broadcast %cst_6 : f32 to vector<8x128xf32>
    %16 = arith.addf %15, %14 : vector<8x128xf32>
    %17 = arith.divf %15, %16 : vector<8x128xf32>
    %18 = vector.extract_strided_slice %7 {offsets = [0, 128], sizes = [8, 128], strides = [1, 1]} : vector<8x384xf32> to vector<8x128xf32>
    %19 = vector.extract_strided_slice %9 {offsets = [0, 128], sizes = [8, 128], strides = [1, 1]} : vector<8x384xf32> to vector<8x128xf32>
    %20 = arith.addf %18, %19 : vector<8x128xf32>
    %21 = arith.negf %20 : vector<8x128xf32>
    %22 = math.exp %21 : vector<8x128xf32>
    %cst_7 = arith.constant 1.000000e+00 : f32
    %23 = vector.broadcast %cst_7 : f32 to vector<8x128xf32>
    %24 = arith.addf %23, %22 : vector<8x128xf32>
    %25 = arith.divf %23, %24 : vector<8x128xf32>
    %26 = vector.extract_strided_slice %7 {offsets = [0, 256], sizes = [8, 128], strides = [1, 1]} : vector<8x384xf32> to vector<8x128xf32>
    %27 = vector.extract_strided_slice %9 {offsets = [0, 256], sizes = [8, 128], strides = [1, 1]} : vector<8x384xf32> to vector<8x128xf32>
    %c0_8 = arith.constant 0 : index
    %c0_9 = arith.constant 0 : index
    %28 = vector.load %arg3[%c0_8, %c0_9] : memref<1x128xf32, #tpu.memory_space<vmem>>, vector<1x128xf32>
    %29 = vector.broadcast %28 : vector<1x128xf32> to vector<8x128xf32>
    %30 = arith.addf %27, %29 : vector<8x128xf32>
    %31 = arith.mulf %17, %30 : vector<8x128xf32>
    %32 = arith.addf %26, %31 : vector<8x128xf32>
    %33 = math.tanh %32 : vector<8x128xf32>
    %cst_10 = arith.constant 1.000000e+00 : f32
    %34 = vector.broadcast %cst_10 : f32 to vector<8x128xf32>
    %35 = arith.subf %34, %25 : vector<8x128xf32>
    %36 = arith.mulf %35, %33 : vector<8x128xf32>
    %37 = arith.mulf %25, %3 : vector<8x128xf32>
    %38 = arith.addf %36, %37 : vector<8x128xf32>
    %c1_i32 = arith.constant 1 : i32
    %c8_i32_11 = arith.constant 8 : i32
    %39 = arith.muli %c1_i32, %c8_i32_11 : i32
    %40 = tpu.assume_multiple %39, 8 : i32
    %41 = arith.index_cast %40 : i32 to index
    %c0_12 = arith.constant 0 : index
    %42 = vector.load %arg1[%41, %c0_12] : memref<64x384xf32, #tpu.memory_space<vmem>>, vector<8x384xf32>
    %c0_13 = arith.constant 0 : index
    %c0_14 = arith.constant 0 : index
    %43 = vector.load %arg2[%c0_13, %c0_14] : memref<128x384xf32, #tpu.memory_space<vmem>>, vector<128x384xf32>
    %cst_15 = arith.constant dense<0.000000e+00> : vector<8x384xf32>
    %44 = tpu.matmul %38, %43, %cst_15 {dimension_numbers = #tpu.dot_dimension_numbers<[1], [0], [0], [1], [0, 0, 1, 1], [], []>} : vector<8x128xf32>, vector<128x384xf32>, vector<8x384xf32> -> vector<8x384xf32>
    %45 = vector.extract_strided_slice %42 {offsets = [0, 0], sizes = [8, 128], strides = [1, 1]} : vector<8x384xf32> to vector<8x128xf32>
    %46 = vector.extract_strided_slice %44 {offsets = [0, 0], sizes = [8, 128], strides = [1, 1]} : vector<8x384xf32> to vector<8x128xf32>
    %47 = arith.addf %45, %46 : vector<8x128xf32>
    %48 = arith.negf %47 : vector<8x128xf32>
    %49 = math.exp %48 : vector<8x128xf32>
    %cst_16 = arith.constant 1.000000e+00 : f32
    %50 = vector.broadcast %cst_16 : f32 to vector<8x128xf32>
    %51 = arith.addf %50, %49 : vector<8x128xf32>
    %52 = arith.divf %50, %51 : vector<8x128xf32>
    %53 = vector.extract_strided_slice %42 {offsets = [0, 128], sizes = [8, 128], strides = [1, 1]} : vector<8x384xf32> to vector<8x128xf32>
    %54 = vector.extract_strided_slice %44 {offsets = [0, 128], sizes = [8, 128], strides = [1, 1]} : vector<8x384xf32> to vector<8x128xf32>
    %55 = arith.addf %53, %54 : vector<8x128xf32>
    %56 = arith.negf %55 : vector<8x128xf32>
    %57 = math.exp %56 : vector<8x128xf32>
    %cst_17 = arith.constant 1.000000e+00 : f32
    %58 = vector.broadcast %cst_17 : f32 to vector<8x128xf32>
    %59 = arith.addf %58, %57 : vector<8x128xf32>
    %60 = arith.divf %58, %59 : vector<8x128xf32>
    %61 = vector.extract_strided_slice %42 {offsets = [0, 256], sizes = [8, 128], strides = [1, 1]} : vector<8x384xf32> to vector<8x128xf32>
    %62 = vector.extract_strided_slice %44 {offsets = [0, 256], sizes = [8, 128], strides = [1, 1]} : vector<8x384xf32> to vector<8x128xf32>
    %c0_18 = arith.constant 0 : index
    %c0_19 = arith.constant 0 : index
    %63 = vector.load %arg3[%c0_18, %c0_19] : memref<1x128xf32, #tpu.memory_space<vmem>>, vector<1x128xf32>
    %64 = vector.broadcast %63 : vector<1x128xf32> to vector<8x128xf32>
    %65 = arith.addf %62, %64 : vector<8x128xf32>
    %66 = arith.mulf %52, %65 : vector<8x128xf32>
    %67 = arith.addf %61, %66 : vector<8x128xf32>
    %68 = math.tanh %67 : vector<8x128xf32>
    %cst_20 = arith.constant 1.000000e+00 : f32
    %69 = vector.broadcast %cst_20 : f32 to vector<8x128xf32>
    %70 = arith.subf %69, %60 : vector<8x128xf32>
    %71 = arith.mulf %70, %68 : vector<8x128xf32>
    %72 = arith.mulf %60, %38 : vector<8x128xf32>
    %73 = arith.addf %71, %72 : vector<8x128xf32>
    %c2_i32 = arith.constant 2 : i32
    %c8_i32_21 = arith.constant 8 : i32
    %74 = arith.muli %c2_i32, %c8_i32_21 : i32
    %75 = tpu.assume_multiple %74, 8 : i32
    %76 = arith.index_cast %75 : i32 to index
    %c0_22 = arith.constant 0 : index
    %77 = vector.load %arg1[%76, %c0_22] : memref<64x384xf32, #tpu.memory_space<vmem>>, vector<8x384xf32>
    %c0_23 = arith.constant 0 : index
    %c0_24 = arith.constant 0 : index
    %78 = vector.load %arg2[%c0_23, %c0_24] : memref<128x384xf32, #tpu.memory_space<vmem>>, vector<128x384xf32>
    %cst_25 = arith.constant dense<0.000000e+00> : vector<8x384xf32>
    %79 = tpu.matmul %73, %78, %cst_25 {dimension_numbers = #tpu.dot_dimension_numbers<[1], [0], [0], [1], [0, 0, 1, 1], [], []>} : vector<8x128xf32>, vector<128x384xf32>, vector<8x384xf32> -> vector<8x384xf32>
    %80 = vector.extract_strided_slice %77 {offsets = [0, 0], sizes = [8, 128], strides = [1, 1]} : vector<8x384xf32> to vector<8x128xf32>
    %81 = vector.extract_strided_slice %79 {offsets = [0, 0], sizes = [8, 128], strides = [1, 1]} : vector<8x384xf32> to vector<8x128xf32>
    %82 = arith.addf %80, %81 : vector<8x128xf32>
    %83 = arith.negf %82 : vector<8x128xf32>
    %84 = math.exp %83 : vector<8x128xf32>
    %cst_26 = arith.constant 1.000000e+00 : f32
    %85 = vector.broadcast %cst_26 : f32 to vector<8x128xf32>
    %86 = arith.addf %85, %84 : vector<8x128xf32>
    %87 = arith.divf %85, %86 : vector<8x128xf32>
    %88 = vector.extract_strided_slice %77 {offsets = [0, 128], sizes = [8, 128], strides = [1, 1]} : vector<8x384xf32> to vector<8x128xf32>
    %89 = vector.extract_strided_slice %79 {offsets = [0, 128], sizes = [8, 128], strides = [1, 1]} : vector<8x384xf32> to vector<8x128xf32>
    %90 = arith.addf %88, %89 : vector<8x128xf32>
    %91 = arith.negf %90 : vector<8x128xf32>
    %92 = math.exp %91 : vector<8x128xf32>
    %cst_27 = arith.constant 1.000000e+00 : f32
    %93 = vector.broadcast %cst_27 : f32 to vector<8x128xf32>
    %94 = arith.addf %93, %92 : vector<8x128xf32>
    %95 = arith.divf %93, %94 : vector<8x128xf32>
    %96 = vector.extract_strided_slice %77 {offsets = [0, 256], sizes = [8, 128], strides = [1, 1]} : vector<8x384xf32> to vector<8x128xf32>
    %97 = vector.extract_strided_slice %79 {offsets = [0, 256], sizes = [8, 128], strides = [1, 1]} : vector<8x384xf32> to vector<8x128xf32>
    %c0_28 = arith.constant 0 : index
    %c0_29 = arith.constant 0 : index
    %98 = vector.load %arg3[%c0_28, %c0_29] : memref<1x128xf32, #tpu.memory_space<vmem>>, vector<1x128xf32>
    %99 = vector.broadcast %98 : vector<1x128xf32> to vector<8x128xf32>
    %100 = arith.addf %97, %99 : vector<8x128xf32>
    %101 = arith.mulf %87, %100 : vector<8x128xf32>
    %102 = arith.addf %96, %101 : vector<8x128xf32>
    %103 = math.tanh %102 : vector<8x128xf32>
    %cst_30 = arith.constant 1.000000e+00 : f32
    %104 = vector.broadcast %cst_30 : f32 to vector<8x128xf32>
    %105 = arith.subf %104, %95 : vector<8x128xf32>
    %106 = arith.mulf %105, %103 : vector<8x128xf32>
    %107 = arith.mulf %95, %73 : vector<8x128xf32>
    %108 = arith.addf %106, %107 : vector<8x128xf32>
    %c3_i32 = arith.constant 3 : i32
    %c8_i32_31 = arith.constant 8 : i32
    %109 = arith.muli %c3_i32, %c8_i32_31 : i32
    %110 = tpu.assume_multiple %109, 8 : i32
    %111 = arith.index_cast %110 : i32 to index
    %c0_32 = arith.constant 0 : index
    %112 = vector.load %arg1[%111, %c0_32] : memref<64x384xf32, #tpu.memory_space<vmem>>, vector<8x384xf32>
    %c0_33 = arith.constant 0 : index
    %c0_34 = arith.constant 0 : index
    %113 = vector.load %arg2[%c0_33, %c0_34] : memref<128x384xf32, #tpu.memory_space<vmem>>, vector<128x384xf32>
    %cst_35 = arith.constant dense<0.000000e+00> : vector<8x384xf32>
    %114 = tpu.matmul %108, %113, %cst_35 {dimension_numbers = #tpu.dot_dimension_numbers<[1], [0], [0], [1], [0, 0, 1, 1], [], []>} : vector<8x128xf32>, vector<128x384xf32>, vector<8x384xf32> -> vector<8x384xf32>
    %115 = vector.extract_strided_slice %112 {offsets = [0, 0], sizes = [8, 128], strides = [1, 1]} : vector<8x384xf32> to vector<8x128xf32>
    %116 = vector.extract_strided_slice %114 {offsets = [0, 0], sizes = [8, 128], strides = [1, 1]} : vector<8x384xf32> to vector<8x128xf32>
    %117 = arith.addf %115, %116 : vector<8x128xf32>
    %118 = arith.negf %117 : vector<8x128xf32>
    %119 = math.exp %118 : vector<8x128xf32>
    %cst_36 = arith.constant 1.000000e+00 : f32
    %120 = vector.broadcast %cst_36 : f32 to vector<8x128xf32>
    %121 = arith.addf %120, %119 : vector<8x128xf32>
    %122 = arith.divf %120, %121 : vector<8x128xf32>
    %123 = vector.extract_strided_slice %112 {offsets = [0, 128], sizes = [8, 128], strides = [1, 1]} : vector<8x384xf32> to vector<8x128xf32>
    %124 = vector.extract_strided_slice %114 {offsets = [0, 128], sizes = [8, 128], strides = [1, 1]} : vector<8x384xf32> to vector<8x128xf32>
    %125 = arith.addf %123, %124 : vector<8x128xf32>
    %126 = arith.negf %125 : vector<8x128xf32>
    %127 = math.exp %126 : vector<8x128xf32>
    %cst_37 = arith.constant 1.000000e+00 : f32
    %128 = vector.broadcast %cst_37 : f32 to vector<8x128xf32>
    %129 = arith.addf %128, %127 : vector<8x128xf32>
    %130 = arith.divf %128, %129 : vector<8x128xf32>
    %131 = vector.extract_strided_slice %112 {offsets = [0, 256], sizes = [8, 128], strides = [1, 1]} : vector<8x384xf32> to vector<8x128xf32>
    %132 = vector.extract_strided_slice %114 {offsets = [0, 256], sizes = [8, 128], strides = [1, 1]} : vector<8x384xf32> to vector<8x128xf32>
    %c0_38 = arith.constant 0 : index
    %c0_39 = arith.constant 0 : index
    %133 = vector.load %arg3[%c0_38, %c0_39] : memref<1x128xf32, #tpu.memory_space<vmem>>, vector<1x128xf32>
    %134 = vector.broadcast %133 : vector<1x128xf32> to vector<8x128xf32>
    %135 = arith.addf %132, %134 : vector<8x128xf32>
    %136 = arith.mulf %122, %135 : vector<8x128xf32>
    %137 = arith.addf %131, %136 : vector<8x128xf32>
    %138 = math.tanh %137 : vector<8x128xf32>
    %cst_40 = arith.constant 1.000000e+00 : f32
    %139 = vector.broadcast %cst_40 : f32 to vector<8x128xf32>
    %140 = arith.subf %139, %130 : vector<8x128xf32>
    %141 = arith.mulf %140, %138 : vector<8x128xf32>
    %142 = arith.mulf %130, %108 : vector<8x128xf32>
    %143 = arith.addf %141, %142 : vector<8x128xf32>
    %c4_i32 = arith.constant 4 : i32
    %c8_i32_41 = arith.constant 8 : i32
    %144 = arith.muli %c4_i32, %c8_i32_41 : i32
    %145 = tpu.assume_multiple %144, 8 : i32
    %146 = arith.index_cast %145 : i32 to index
    %c0_42 = arith.constant 0 : index
    %147 = vector.load %arg1[%146, %c0_42] : memref<64x384xf32, #tpu.memory_space<vmem>>, vector<8x384xf32>
    %c0_43 = arith.constant 0 : index
    %c0_44 = arith.constant 0 : index
    %148 = vector.load %arg2[%c0_43, %c0_44] : memref<128x384xf32, #tpu.memory_space<vmem>>, vector<128x384xf32>
    %cst_45 = arith.constant dense<0.000000e+00> : vector<8x384xf32>
    %149 = tpu.matmul %143, %148, %cst_45 {dimension_numbers = #tpu.dot_dimension_numbers<[1], [0], [0], [1], [0, 0, 1, 1], [], []>} : vector<8x128xf32>, vector<128x384xf32>, vector<8x384xf32> -> vector<8x384xf32>
    %150 = vector.extract_strided_slice %147 {offsets = [0, 0], sizes = [8, 128], strides = [1, 1]} : vector<8x384xf32> to vector<8x128xf32>
    %151 = vector.extract_strided_slice %149 {offsets = [0, 0], sizes = [8, 128], strides = [1, 1]} : vector<8x384xf32> to vector<8x128xf32>
    %152 = arith.addf %150, %151 : vector<8x128xf32>
    %153 = arith.negf %152 : vector<8x128xf32>
    %154 = math.exp %153 : vector<8x128xf32>
    %cst_46 = arith.constant 1.000000e+00 : f32
    %155 = vector.broadcast %cst_46 : f32 to vector<8x128xf32>
    %156 = arith.addf %155, %154 : vector<8x128xf32>
    %157 = arith.divf %155, %156 : vector<8x128xf32>
    %158 = vector.extract_strided_slice %147 {offsets = [0, 128], sizes = [8, 128], strides = [1, 1]} : vector<8x384xf32> to vector<8x128xf32>
    %159 = vector.extract_strided_slice %149 {offsets = [0, 128], sizes = [8, 128], strides = [1, 1]} : vector<8x384xf32> to vector<8x128xf32>
    %160 = arith.addf %158, %159 : vector<8x128xf32>
    %161 = arith.negf %160 : vector<8x128xf32>
    %162 = math.exp %161 : vector<8x128xf32>
    %cst_47 = arith.constant 1.000000e+00 : f32
    %163 = vector.broadcast %cst_47 : f32 to vector<8x128xf32>
    %164 = arith.addf %163, %162 : vector<8x128xf32>
    %165 = arith.divf %163, %164 : vector<8x128xf32>
    %166 = vector.extract_strided_slice %147 {offsets = [0, 256], sizes = [8, 128], strides = [1, 1]} : vector<8x384xf32> to vector<8x128xf32>
    %167 = vector.extract_strided_slice %149 {offsets = [0, 256], sizes = [8, 128], strides = [1, 1]} : vector<8x384xf32> to vector<8x128xf32>
    %c0_48 = arith.constant 0 : index
    %c0_49 = arith.constant 0 : index
    %168 = vector.load %arg3[%c0_48, %c0_49] : memref<1x128xf32, #tpu.memory_space<vmem>>, vector<1x128xf32>
    %169 = vector.broadcast %168 : vector<1x128xf32> to vector<8x128xf32>
    %170 = arith.addf %167, %169 : vector<8x128xf32>
    %171 = arith.mulf %157, %170 : vector<8x128xf32>
    %172 = arith.addf %166, %171 : vector<8x128xf32>
    %173 = math.tanh %172 : vector<8x128xf32>
    %cst_50 = arith.constant 1.000000e+00 : f32
    %174 = vector.broadcast %cst_50 : f32 to vector<8x128xf32>
    %175 = arith.subf %174, %165 : vector<8x128xf32>
    %176 = arith.mulf %175, %173 : vector<8x128xf32>
    %177 = arith.mulf %165, %143 : vector<8x128xf32>
    %178 = arith.addf %176, %177 : vector<8x128xf32>
    %c5_i32 = arith.constant 5 : i32
    %c8_i32_51 = arith.constant 8 : i32
    %179 = arith.muli %c5_i32, %c8_i32_51 : i32
    %180 = tpu.assume_multiple %179, 8 : i32
    %181 = arith.index_cast %180 : i32 to index
    %c0_52 = arith.constant 0 : index
    %182 = vector.load %arg1[%181, %c0_52] : memref<64x384xf32, #tpu.memory_space<vmem>>, vector<8x384xf32>
    %c0_53 = arith.constant 0 : index
    %c0_54 = arith.constant 0 : index
    %183 = vector.load %arg2[%c0_53, %c0_54] : memref<128x384xf32, #tpu.memory_space<vmem>>, vector<128x384xf32>
    %cst_55 = arith.constant dense<0.000000e+00> : vector<8x384xf32>
    %184 = tpu.matmul %178, %183, %cst_55 {dimension_numbers = #tpu.dot_dimension_numbers<[1], [0], [0], [1], [0, 0, 1, 1], [], []>} : vector<8x128xf32>, vector<128x384xf32>, vector<8x384xf32> -> vector<8x384xf32>
    %185 = vector.extract_strided_slice %182 {offsets = [0, 0], sizes = [8, 128], strides = [1, 1]} : vector<8x384xf32> to vector<8x128xf32>
    %186 = vector.extract_strided_slice %184 {offsets = [0, 0], sizes = [8, 128], strides = [1, 1]} : vector<8x384xf32> to vector<8x128xf32>
    %187 = arith.addf %185, %186 : vector<8x128xf32>
    %188 = arith.negf %187 : vector<8x128xf32>
    %189 = math.exp %188 : vector<8x128xf32>
    %cst_56 = arith.constant 1.000000e+00 : f32
    %190 = vector.broadcast %cst_56 : f32 to vector<8x128xf32>
    %191 = arith.addf %190, %189 : vector<8x128xf32>
    %192 = arith.divf %190, %191 : vector<8x128xf32>
    %193 = vector.extract_strided_slice %182 {offsets = [0, 128], sizes = [8, 128], strides = [1, 1]} : vector<8x384xf32> to vector<8x128xf32>
    %194 = vector.extract_strided_slice %184 {offsets = [0, 128], sizes = [8, 128], strides = [1, 1]} : vector<8x384xf32> to vector<8x128xf32>
    %195 = arith.addf %193, %194 : vector<8x128xf32>
    %196 = arith.negf %195 : vector<8x128xf32>
    %197 = math.exp %196 : vector<8x128xf32>
    %cst_57 = arith.constant 1.000000e+00 : f32
    %198 = vector.broadcast %cst_57 : f32 to vector<8x128xf32>
    %199 = arith.addf %198, %197 : vector<8x128xf32>
    %200 = arith.divf %198, %199 : vector<8x128xf32>
    %201 = vector.extract_strided_slice %182 {offsets = [0, 256], sizes = [8, 128], strides = [1, 1]} : vector<8x384xf32> to vector<8x128xf32>
    %202 = vector.extract_strided_slice %184 {offsets = [0, 256], sizes = [8, 128], strides = [1, 1]} : vector<8x384xf32> to vector<8x128xf32>
    %c0_58 = arith.constant 0 : index
    %c0_59 = arith.constant 0 : index
    %203 = vector.load %arg3[%c0_58, %c0_59] : memref<1x128xf32, #tpu.memory_space<vmem>>, vector<1x128xf32>
    %204 = vector.broadcast %203 : vector<1x128xf32> to vector<8x128xf32>
    %205 = arith.addf %202, %204 : vector<8x128xf32>
    %206 = arith.mulf %192, %205 : vector<8x128xf32>
    %207 = arith.addf %201, %206 : vector<8x128xf32>
    %208 = math.tanh %207 : vector<8x128xf32>
    %cst_60 = arith.constant 1.000000e+00 : f32
    %209 = vector.broadcast %cst_60 : f32 to vector<8x128xf32>
    %210 = arith.subf %209, %200 : vector<8x128xf32>
    %211 = arith.mulf %210, %208 : vector<8x128xf32>
    %212 = arith.mulf %200, %178 : vector<8x128xf32>
    %213 = arith.addf %211, %212 : vector<8x128xf32>
    %c6_i32 = arith.constant 6 : i32
    %c8_i32_61 = arith.constant 8 : i32
    %214 = arith.muli %c6_i32, %c8_i32_61 : i32
    %215 = tpu.assume_multiple %214, 8 : i32
    %216 = arith.index_cast %215 : i32 to index
    %c0_62 = arith.constant 0 : index
    %217 = vector.load %arg1[%216, %c0_62] : memref<64x384xf32, #tpu.memory_space<vmem>>, vector<8x384xf32>
    %c0_63 = arith.constant 0 : index
    %c0_64 = arith.constant 0 : index
    %218 = vector.load %arg2[%c0_63, %c0_64] : memref<128x384xf32, #tpu.memory_space<vmem>>, vector<128x384xf32>
    %cst_65 = arith.constant dense<0.000000e+00> : vector<8x384xf32>
    %219 = tpu.matmul %213, %218, %cst_65 {dimension_numbers = #tpu.dot_dimension_numbers<[1], [0], [0], [1], [0, 0, 1, 1], [], []>} : vector<8x128xf32>, vector<128x384xf32>, vector<8x384xf32> -> vector<8x384xf32>
    %220 = vector.extract_strided_slice %217 {offsets = [0, 0], sizes = [8, 128], strides = [1, 1]} : vector<8x384xf32> to vector<8x128xf32>
    %221 = vector.extract_strided_slice %219 {offsets = [0, 0], sizes = [8, 128], strides = [1, 1]} : vector<8x384xf32> to vector<8x128xf32>
    %222 = arith.addf %220, %221 : vector<8x128xf32>
    %223 = arith.negf %222 : vector<8x128xf32>
    %224 = math.exp %223 : vector<8x128xf32>
    %cst_66 = arith.constant 1.000000e+00 : f32
    %225 = vector.broadcast %cst_66 : f32 to vector<8x128xf32>
    %226 = arith.addf %225, %224 : vector<8x128xf32>
    %227 = arith.divf %225, %226 : vector<8x128xf32>
    %228 = vector.extract_strided_slice %217 {offsets = [0, 128], sizes = [8, 128], strides = [1, 1]} : vector<8x384xf32> to vector<8x128xf32>
    %229 = vector.extract_strided_slice %219 {offsets = [0, 128], sizes = [8, 128], strides = [1, 1]} : vector<8x384xf32> to vector<8x128xf32>
    %230 = arith.addf %228, %229 : vector<8x128xf32>
    %231 = arith.negf %230 : vector<8x128xf32>
    %232 = math.exp %231 : vector<8x128xf32>
    %cst_67 = arith.constant 1.000000e+00 : f32
    %233 = vector.broadcast %cst_67 : f32 to vector<8x128xf32>
    %234 = arith.addf %233, %232 : vector<8x128xf32>
    %235 = arith.divf %233, %234 : vector<8x128xf32>
    %236 = vector.extract_strided_slice %217 {offsets = [0, 256], sizes = [8, 128], strides = [1, 1]} : vector<8x384xf32> to vector<8x128xf32>
    %237 = vector.extract_strided_slice %219 {offsets = [0, 256], sizes = [8, 128], strides = [1, 1]} : vector<8x384xf32> to vector<8x128xf32>
    %c0_68 = arith.constant 0 : index
    %c0_69 = arith.constant 0 : index
    %238 = vector.load %arg3[%c0_68, %c0_69] : memref<1x128xf32, #tpu.memory_space<vmem>>, vector<1x128xf32>
    %239 = vector.broadcast %238 : vector<1x128xf32> to vector<8x128xf32>
    %240 = arith.addf %237, %239 : vector<8x128xf32>
    %241 = arith.mulf %227, %240 : vector<8x128xf32>
    %242 = arith.addf %236, %241 : vector<8x128xf32>
    %243 = math.tanh %242 : vector<8x128xf32>
    %cst_70 = arith.constant 1.000000e+00 : f32
    %244 = vector.broadcast %cst_70 : f32 to vector<8x128xf32>
    %245 = arith.subf %244, %235 : vector<8x128xf32>
    %246 = arith.mulf %245, %243 : vector<8x128xf32>
    %247 = arith.mulf %235, %213 : vector<8x128xf32>
    %248 = arith.addf %246, %247 : vector<8x128xf32>
    %c7_i32 = arith.constant 7 : i32
    %c8_i32_71 = arith.constant 8 : i32
    %249 = arith.muli %c7_i32, %c8_i32_71 : i32
    %250 = tpu.assume_multiple %249, 8 : i32
    %251 = arith.index_cast %250 : i32 to index
    %c0_72 = arith.constant 0 : index
    %252 = vector.load %arg1[%251, %c0_72] : memref<64x384xf32, #tpu.memory_space<vmem>>, vector<8x384xf32>
    %c0_73 = arith.constant 0 : index
    %c0_74 = arith.constant 0 : index
    %253 = vector.load %arg2[%c0_73, %c0_74] : memref<128x384xf32, #tpu.memory_space<vmem>>, vector<128x384xf32>
    %cst_75 = arith.constant dense<0.000000e+00> : vector<8x384xf32>
    %254 = tpu.matmul %248, %253, %cst_75 {dimension_numbers = #tpu.dot_dimension_numbers<[1], [0], [0], [1], [0, 0, 1, 1], [], []>} : vector<8x128xf32>, vector<128x384xf32>, vector<8x384xf32> -> vector<8x384xf32>
    %255 = vector.extract_strided_slice %252 {offsets = [0, 0], sizes = [8, 128], strides = [1, 1]} : vector<8x384xf32> to vector<8x128xf32>
    %256 = vector.extract_strided_slice %254 {offsets = [0, 0], sizes = [8, 128], strides = [1, 1]} : vector<8x384xf32> to vector<8x128xf32>
    %257 = arith.addf %255, %256 : vector<8x128xf32>
    %258 = arith.negf %257 : vector<8x128xf32>
    %259 = math.exp %258 : vector<8x128xf32>
    %cst_76 = arith.constant 1.000000e+00 : f32
    %260 = vector.broadcast %cst_76 : f32 to vector<8x128xf32>
    %261 = arith.addf %260, %259 : vector<8x128xf32>
    %262 = arith.divf %260, %261 : vector<8x128xf32>
    %263 = vector.extract_strided_slice %252 {offsets = [0, 128], sizes = [8, 128], strides = [1, 1]} : vector<8x384xf32> to vector<8x128xf32>
    %264 = vector.extract_strided_slice %254 {offsets = [0, 128], sizes = [8, 128], strides = [1, 1]} : vector<8x384xf32> to vector<8x128xf32>
    %265 = arith.addf %263, %264 : vector<8x128xf32>
    %266 = arith.negf %265 : vector<8x128xf32>
    %267 = math.exp %266 : vector<8x128xf32>
    %cst_77 = arith.constant 1.000000e+00 : f32
    %268 = vector.broadcast %cst_77 : f32 to vector<8x128xf32>
    %269 = arith.addf %268, %267 : vector<8x128xf32>
    %270 = arith.divf %268, %269 : vector<8x128xf32>
    %271 = vector.extract_strided_slice %252 {offsets = [0, 256], sizes = [8, 128], strides = [1, 1]} : vector<8x384xf32> to vector<8x128xf32>
    %272 = vector.extract_strided_slice %254 {offsets = [0, 256], sizes = [8, 128], strides = [1, 1]} : vector<8x384xf32> to vector<8x128xf32>
    %c0_78 = arith.constant 0 : index
    %c0_79 = arith.constant 0 : index
    %273 = vector.load %arg3[%c0_78, %c0_79] : memref<1x128xf32, #tpu.memory_space<vmem>>, vector<1x128xf32>
    %274 = vector.broadcast %273 : vector<1x128xf32> to vector<8x128xf32>
    %275 = arith.addf %272, %274 : vector<8x128xf32>
    %276 = arith.mulf %262, %275 : vector<8x128xf32>
    %277 = arith.addf %271, %276 : vector<8x128xf32>
    %278 = math.tanh %277 : vector<8x128xf32>
    %cst_80 = arith.constant 1.000000e+00 : f32
    %279 = vector.broadcast %cst_80 : f32 to vector<8x128xf32>
    %280 = arith.subf %279, %270 : vector<8x128xf32>
    %281 = arith.mulf %280, %278 : vector<8x128xf32>
    %282 = arith.mulf %270, %248 : vector<8x128xf32>
    %283 = arith.addf %281, %282 : vector<8x128xf32>
    %c8_i32_81 = arith.constant 8 : i32
    %c0_82 = arith.constant 0 : index
    %c0_83 = arith.constant 0 : index
    %284 = vector.load %arg5[%c0_82, %c0_83] : memref<8x128xf32, #tpu.memory_space<vmem>>, vector<8x128xf32>
    tpu.vector_store %arg5[%c0_82, %c0_83], %283 {strides = array<i32>} : memref<8x128xf32, #tpu.memory_space<vmem>>, vector<8x128xf32>,
    %c0_84 = arith.constant 0 : index
    %c0_85 = arith.constant 0 : index
    %285 = vector.load %arg4[%c0_84, %c0_85] : memref<8x128xf32, #tpu.memory_space<vmem>>, vector<8x128xf32>
    tpu.vector_store %arg4[%c0_84, %c0_85], %283 {strides = array<i32>} : memref<8x128xf32, #tpu.memory_space<vmem>>, vector<8x128xf32>,
    return
  }
  func.func @transform_0(%arg0: i32) -> (i32, i32) {
    %c0_i32 = arith.constant 0 : i32
    %c0_i32_0 = arith.constant 0 : i32
    return %arg0, %c0_i32 : i32, i32
  }
  func.func @transform_1(%arg0: i32) -> (i32, i32) {
    %c0_i32 = arith.constant 0 : i32
    %c0_i32_0 = arith.constant 0 : i32
    %c0_i32_1 = arith.constant 0 : i32
    return %c0_i32, %c0_i32_0 : i32, i32
  }
  func.func @transform_2(%arg0: i32) -> (i32, i32) {
    %c0_i32 = arith.constant 0 : i32
    %c0_i32_0 = arith.constant 0 : i32
    %c0_i32_1 = arith.constant 0 : i32
    return %c0_i32, %c0_i32_0 : i32, i32
  }
  func.func @transform_3(%arg0: i32) -> (i32, i32) {
    %c0_i32 = arith.constant 0 : i32
    %c0_i32_0 = arith.constant 0 : i32
    %c0_i32_1 = arith.constant 0 : i32
    return %c0_i32, %c0_i32_0 : i32, i32
  }
}

</mosaic_0001>

<llo_original>
// kernel: tpu_custom_call.1
$region0: #{tpu_custom_call.1}
  #allocation0 [shape = 'u32[]', space=smem, size = 0x4, offset = 0x4, fixed_abs, tag = 'smem constant byte address 0x4 - core index']
  #allocation1 [shape = 'u32[72,128]{1,0:T(1,128)}', space=vmem, size = 0x9000, scoped, tag = 'internal scratch']
  #allocation2 [shape = 'f32[8,128]{1,0:T(8,128)}', space=vmem, size = 0x1000, scoped, tag = 'scratch operand']
  %s0 = inlined_call_operand.hbm [shape: f32[64,384], index: 0, kind: input, shape index: {}]
  %s1 = inlined_call_operand.hbm [shape: f32[128,384], index: 1, kind: input, shape index: {}]
  %s2 = inlined_call_operand.vmem [shape: f32[1,128], index: 2, kind: input, shape index: {}]
  %s3 = inlined_call_operand.hbm [shape: f32[8,128], index: 3, kind: output, shape index: {}]
  %s4 = sld [smem:[#allocation0]]
  $region34: #{tpu_custom_call.1} parent=0
    _
  %s6 = ssub.s32 1, %s4
  %s7 = scalar_select 0, %s6, %s4
  $region1: #{tpu_custom_call.1} parent=0
    #allocation3 [shape = 'u8[98304]{0}', space=vmem, size = 0x18000, scoped, tag = 'input window, operand 0, single buffered']
    #allocation4 [shape = 's32[1]{0}', space=sflag, size = 0x4, scoped, tag = 'scoped memory for tpu_custom_call.1']
    #allocation5 [shape = 's32[1]{0}', space=sflag, size = 0x4, scoped, tag = 'scoped memory for tpu_custom_call.1']
    #allocation6 [shape = 'u8[196608]{0}', space=vmem, size = 0x30000, scoped, tag = 'input window, operand 1, single buffered']
    #allocation7 [shape = 's32[1]{0}', space=sflag, size = 0x4, scoped, tag = 'scoped memory for tpu_custom_call.1']
    #allocation8 [shape = 'u8[4096]{0}', space=vmem, size = 0x1000, scoped, tag = 'output window, operand 0, single buffered']
    %8 = vsyncpa [#allocation4], 0
    %9 = vsyncpa [#allocation7], 0
    %10 = vsyncpa [#allocation5], 0
    // Predicated region
    $region2: #{tpu_custom_call.1} parent=1 // pred_check
      _
    $region3: #{tpu_custom_call.1} parent=1 // pred_check_branch
      %12 = sbr.rel (0) target = $region5
    $region4: #{tpu_custom_call.1} parent=1 // pred_region
      %14 = vsyncadd [#allocation4], 0
      %s15 = sshll.u32 %s0, 4
      %s16 = int_to_ptr.hbm [resolvable:$true] %s15
      %s17 = sshll.u32 [#allocation3], 4
      %s18 = int_to_ptr.vmem [resolvable:$true] %s17
      %23 = dma.hbm_to_vmem [thread:$0]  %s16, 3072, %s18, [#allocation4], 384, 384, 24
    $region5: #{tpu_custom_call.1} parent=1 // pred_fallthru
      _
    // Predicated region
    $region6: #{tpu_custom_call.1} parent=1 // pred_check
      _
    $region7: #{tpu_custom_call.1} parent=1 // pred_check_branch
      %25 = sbr.rel (0) target = $region9
    $region8: #{tpu_custom_call.1} parent=1 // pred_region
      %27 = vsyncadd [#allocation7], 0
      %s28 = sshll.u32 %s1, 4
      %s29 = int_to_ptr.hbm [resolvable:$true] %s28
      %s30 = sshll.u32 [#allocation6], 4
      %s31 = int_to_ptr.vmem [resolvable:$true] %s30
      %36 = dma.hbm_to_vmem [thread:$0]  %s29, 6144, %s31, [#allocation7], 384, 384, 24
    $region9: #{tpu_custom_call.1} parent=1 // pred_fallthru
      _
    // Predicated region
    $region10: #{tpu_custom_call.1} parent=1 // pred_check
      _
    $region11: #{tpu_custom_call.1} parent=1 // pred_check_branch
      %38 = sbr.rel (0) target = $region13
    $region12: #{tpu_custom_call.1} parent=1 // pred_region
      _
    $region13: #{tpu_custom_call.1} parent=1 // pred_fallthru
      _
    // Predicated region
    $region14: #{tpu_custom_call.1} parent=1 // pred_check
      _
    $region15: #{tpu_custom_call.1} parent=1 // pred_check_branch
      %40 = sbr.rel (0) target = $region17
    $region16: #{tpu_custom_call.1} parent=1 // pred_region
      %42 = dma.done [#allocation4], 3072
    $region17: #{tpu_custom_call.1} parent=1 // pred_fallthru
      _
    // Predicated region
    $region18: #{tpu_custom_call.1} parent=1 // pred_check
      _
    $region19: #{tpu_custom_call.1} parent=1 // pred_check_branch
      %44 = sbr.rel (0) target = $region21
    $region20: #{tpu_custom_call.1} parent=1 // pred_region
      %46 = dma.done [#allocation7], 6144
    $region21: #{tpu_custom_call.1} parent=1 // pred_fallthru
      _
    %p47 = scmp.eq.s32.totalorder 0, 0
    // Predicated region
    $region22: #{tpu_custom_call.1} parent=1 // pred_check
      %p48 = pneg %p47
    $region23: #{tpu_custom_call.1} parent=1 // pred_check_branch
      %50 = sbr.rel (%p48) target = $region25
    $region24: #{tpu_custom_call.1} parent=1 // pred_region
      %51 = vst [vmem:[#allocation2] sm:$0xff] 0.0
    $region25: #{tpu_custom_call.1} parent=1 // pred_fallthru
      _
    %v52 = vld [vmem:[#allocation2] sm:$0xff]
    %s53 = smul.u32 0, 3
    %s54 = smul.addr %s53, 8
    %s55 = scalar_lea.vmem [#allocation3], %s54
    %v56 = vld [vmem:[%s55] sm:$0xff]
    %v57 = vld [vmem:[%s55 + $0x8] sm:$0xff]
    %v58 = vld [vmem:[%s55 + $0x10] sm:$0xff]
    %v59 = vld [vmem:[#allocation6] sm:$0xff]
    %v60 = vld [vmem:[#allocation6 + $0x8] sm:$0xff]
    %v61 = vld [vmem:[#allocation6 + $0x10] sm:$0xff]
    %v62 = vld [vmem:[#allocation6 + $0x18] sm:$0xff]
    %v63 = vld [vmem:[#allocation6 + $0x20] sm:$0xff]
    %v64 = vld [vmem:[#allocation6 + $0x28] sm:$0xff]
    %v65 = vld [vmem:[#allocation6 + $0x30] sm:$0xff]
    %v66 = vld [vmem:[#allocation6 + $0x38] sm:$0xff]
    %v67 = vld [vmem:[#allocation6 + $0x40] sm:$0xff]
    %v68 = vld [vmem:[#allocation6 + $0x48] sm:$0xff]
    %v69 = vld [vmem:[#allocation6 + $0x50] sm:$0xff]
    %v70 = vld [vmem:[#allocation6 + $0x58] sm:$0xff]
    %v71 = vld [vmem:[#allocation6 + $0x60] sm:$0xff]
    %v72 = vld [vmem:[#allocation6 + $0x68] sm:$0xff]
    %v73 = vld [vmem:[#allocation6 + $0x70] sm:$0xff]
    %v74 = vld [vmem:[#allocation6 + $0x78] sm:$0xff]
    %v75 = vld [vmem:[#allocation6 + $0x80] sm:$0xff]
    %v76 = vld [vmem:[#allocation6 + $0x88] sm:$0xff]
    %v77 = vld [vmem:[#allocation6 + $0x90] sm:$0xff]
    %v78 = vld [vmem:[#allocation6 + $0x98] sm:$0xff]
    %v79 = vld [vmem:[#allocation6 + $0xa0] sm:$0xff]
    %v80 = vld [vmem:[#allocation6 + $0xa8] sm:$0xff]
    %v81 = vld [vmem:[#allocation6 + $0xb0] sm:$0xff]
    %v82 = vld [vmem:[#allocation6 + $0xb8] sm:$0xff]
    %v83 = vld [vmem:[#allocation6 + $0xc0] sm:$0xff]
    %v84 = vld [vmem:[#allocation6 + $0xc8] sm:$0xff]
    %v85 = vld [vmem:[#allocation6 + $0xd0] sm:$0xff]
    %v86 = vld [vmem:[#allocation6 + $0xd8] sm:$0xff]
    %v87 = vld [vmem:[#allocation6 + $0xe0] sm:$0xff]
    %v88 = vld [vmem:[#allocation6 + $0xe8] sm:$0xff]
    %v89 = vld [vmem:[#allocation6 + $0xf0] sm:$0xff]
    %v90 = vld [vmem:[#allocation6 + $0xf8] sm:$0xff]
    %v91 = vld [vmem:[#allocation6 + $0x100] sm:$0xff]
    %v92 = vld [vmem:[#allocation6 + $0x108] sm:$0xff]
    %v93 = vld [vmem:[#allocation6 + $0x110] sm:$0xff]
    %v94 = vld [vmem:[#allocation6 + $0x118] sm:$0xff]
    %v95 = vld [vmem:[#allocation6 + $0x120] sm:$0xff]
    %v96 = vld [vmem:[#allocation6 + $0x128] sm:$0xff]
    %v97 = vld [vmem:[#allocation6 + $0x130] sm:$0xff]
    %v98 = vld [vmem:[#allocation6 + $0x138] sm:$0xff]
    %v99 = vld [vmem:[#allocation6 + $0x140] sm:$0xff]
    %v100 = vld [vmem:[#allocation6 + $0x148] sm:$0xff]
    %v101 = vld [vmem:[#allocation6 + $0x150] sm:$0xff]
    %v102 = vld [vmem:[#allocation6 + $0x158] sm:$0xff]
    %v103 = vld [vmem:[#allocation6 + $0x160] sm:$0xff]
    %v104 = vld [vmem:[#allocation6 + $0x168] sm:$0xff]
    %v105 = vld [vmem:[#allocation6 + $0x170] sm:$0xff]
    %v106 = vld [vmem:[#allocation6 + $0x178] sm:$0xff]
    %107 = vmatpush.msra.mxu0 %v104
    %108 = vmatpush.msra.mxu0 %v101
    %109 = vmatpush.msra.mxu0 %v98
    %110 = vmatpush.msra.mxu0 %v95
    %111 = vmatpush.msra.mxu0 %v92
    %112 = vmatpush.msra.mxu0 %v89
    %113 = vmatpush.msra.mxu0 %v86
    %114 = vmatpush.msra.mxu0 %v83
    %115 = vmatpush.msra.mxu0 %v80
    %116 = vmatpush.msra.mxu0 %v77
    %117 = vmatpush.msra.mxu0 %v74
    %118 = vmatpush.msra.mxu0 %v71
    %119 = vmatpush.msra.mxu0 %v68
    %120 = vmatpush.msra.mxu0 %v65
    %121 = vmatpush.msra.mxu0 %v62
    %122 = vmatpush.msra.mxu0 %v59
    %123 = vmatmul.f32.gmra.mxu0 %v52
    %v124 = vpop.f32.mrf.mxu0
    %v125 = vadd.f32 0.0, %v124
    %126 = vdwg.mxu0
    %127 = vmatpush.msra.mxu0 %v105
    %128 = vmatpush.msra.mxu0 %v102
    %129 = vmatpush.msra.mxu0 %v99
    %130 = vmatpush.msra.mxu0 %v96
    %131 = vmatpush.msra.mxu0 %v93
    %132 = vmatpush.msra.mxu0 %v90
    %133 = vmatpush.msra.mxu0 %v87
    %134 = vmatpush.msra.mxu0 %v84
    %135 = vmatpush.msra.mxu0 %v81
    %136 = vmatpush.msra.mxu0 %v78
    %137 = vmatpush.msra.mxu0 %v75
    %138 = vmatpush.msra.mxu0 %v72
    %139 = vmatpush.msra.mxu0 %v69
    %140 = vmatpush.msra.mxu0 %v66
    %141 = vmatpush.msra.mxu0 %v63
    %142 = vmatpush.msra.mxu0 %v60
    %143 = vmatmul.f32.gmra.mxu0 %v52
    %v144 = vpop.f32.mrf.mxu0
    %v145 = vadd.f32 0.0, %v144
    %146 = vdwg.mxu0
    %147 = vmatpush.msra.mxu0 %v106
    %148 = vmatpush.msra.mxu0 %v103
    %149 = vmatpush.msra.mxu0 %v100
    %150 = vmatpush.msra.mxu0 %v97
    %151 = vmatpush.msra.mxu0 %v94
    %152 = vmatpush.msra.mxu0 %v91
    %153 = vmatpush.msra.mxu0 %v88
    %154 = vmatpush.msra.mxu0 %v85
    %155 = vmatpush.msra.mxu0 %v82
    %156 = vmatpush.msra.mxu0 %v79
    %157 = vmatpush.msra.mxu0 %v76
    %158 = vmatpush.msra.mxu0 %v73
    %159 = vmatpush.msra.mxu0 %v70
    %160 = vmatpush.msra.mxu0 %v67
    %161 = vmatpush.msra.mxu0 %v64
    %162 = vmatpush.msra.mxu0 %v61
    %163 = vmatmul.f32.gmra.mxu0 %v52
    %v164 = vpop.f32.mrf.mxu0
    %v165 = vadd.f32 0.0, %v164
    %166 = vdwg.mxu0
    %v167 = vadd.f32 %v56, %v125
    %v168 = vxor.u32 %v167, 2147483648
    %v169 = vmul.f32 %v168, 1.442695
    %v170 = vpow.pop %v169
    %v171 = vadd.f32 %v170, 1.0
    %v172 = vrcp.pop %v171
    %v173 = vmul.f32 %v171, %v172
    %v174 = vsub.f32 1.0, %v173
    %v175 = vmul.f32 %v172, %v174
    %v176 = vadd.f32 %v172, %v175
    %vm177 = vweird.f32 %v171
    %vm178 = vweird.f32 %v172
    %vm179 = vmor %vm177, %vm178
    %v180 = vsel %vm179, %v172, %v176
    %v181 = vand.u32 2147483647, %v171
    %vm182 = vcmp.eq.f32.partialorder %v181, 8.507059e+37
    %v183 = vand.u32 %v171, 2147483648
    %v184 = vor.u32 1.1754944e-38, %v183
    %v185 = vsel %vm182, %v184, %v180
    %v186 = vmul.f32 1.0, %v185
    %v187 = vadd.f32 %v57, %v145
    %v188 = vxor.u32 %v187, 2147483648
    %v189 = vmul.f32 %v188, 1.442695
    %v190 = vpow.pop %v189
    %v191 = vadd.f32 %v190, 1.0
    %v192 = vrcp.pop %v191
    %v193 = vmul.f32 %v191, %v192
    %v194 = vsub.f32 1.0, %v193
    %v195 = vmul.f32 %v192, %v194
    %v196 = vadd.f32 %v192, %v195
    %vm197 = vweird.f32 %v191
    %vm198 = vweird.f32 %v192
    %vm199 = vmor %vm197, %vm198
    %v200 = vsel %vm199, %v192, %v196
    %v201 = vand.u32 2147483647, %v191
    %vm202 = vcmp.eq.f32.partialorder %v201, 8.507059e+37
    %v203 = vand.u32 %v191, 2147483648
    %v204 = vor.u32 1.1754944e-38, %v203
    %v205 = vsel %vm202, %v204, %v200
    %v206 = vmul.f32 1.0, %v205
    %v207 = vld [vmem:[%s2] sm:$0x1]
    %v209 = vperm.slane %v207, 0
    %v211 = vadd.f32 %v165, %v209
    %v212 = vmul.f32 %v186, %v211
    %v213 = vadd.f32 %v58, %v212
    %v214 = vtanh.pop %v213
    %v215 = vsub.f32 1.0, %v206
    %v216 = vmul.f32 %v215, %v214
    %v217 = vmul.f32 %v206, %v52
    %v218 = vadd.f32 %v216, %v217
    %s219 = smul.u32 1, 3
    %s220 = smul.addr %s219, 8
    %s221 = scalar_lea.vmem [#allocation3], %s220
    %v222 = vld [vmem:[%s221] sm:$0xff]
    %v223 = vld [vmem:[%s221 + $0x8] sm:$0xff]
    %v224 = vld [vmem:[%s221 + $0x10] sm:$0xff]
    %225 = vmatpush.msra.mxu0 %v104
    %226 = vmatpush.msra.mxu0 %v101
    %227 = vmatpush.msra.mxu0 %v98
    %228 = vmatpush.msra.mxu0 %v95
    %229 = vmatpush.msra.mxu0 %v92
    %230 = vmatpush.msra.mxu0 %v89
    %231 = vmatpush.msra.mxu0 %v86
    %232 = vmatpush.msra.mxu0 %v83
    %233 = vmatpush.msra.mxu0 %v80
    %234 = vmatpush.msra.mxu0 %v77
    %235 = vmatpush.msra.mxu0 %v74
    %236 = vmatpush.msra.mxu0 %v71
    %237 = vmatpush.msra.mxu0 %v68
    %238 = vmatpush.msra.mxu0 %v65
    %239 = vmatpush.msra.mxu0 %v62
    %240 = vmatpush.msra.mxu0 %v59
    %241 = vmatmul.f32.gmra.mxu0 %v218
    %v242 = vpop.f32.mrf.mxu0
    %v243 = vadd.f32 0.0, %v242
    %244 = vdwg.mxu0
    %245 = vmatpush.msra.mxu0 %v105
    %246 = vmatpush.msra.mxu0 %v102
    %247 = vmatpush.msra.mxu0 %v99
    %248 = vmatpush.msra.mxu0 %v96
    %249 = vmatpush.msra.mxu0 %v93
    %250 = vmatpush.msra.mxu0 %v90
    %251 = vmatpush.msra.mxu0 %v87
    %252 = vmatpush.msra.mxu0 %v84
    %253 = vmatpush.msra.mxu0 %v81
    %254 = vmatpush.msra.mxu0 %v78
    %255 = vmatpush.msra.mxu0 %v75
    %256 = vmatpush.msra.mxu0 %v72
    %257 = vmatpush.msra.mxu0 %v69
    %258 = vmatpush.msra.mxu0 %v66
    %259 = vmatpush.msra.mxu0 %v63
    %260 = vmatpush.msra.mxu0 %v60
    %261 = vmatmul.f32.gmra.mxu0 %v218
    %v262 = vpop.f32.mrf.mxu0
    %v263 = vadd.f32 0.0, %v262
    %264 = vdwg.mxu0
    %265 = vmatpush.msra.mxu0 %v106
    %266 = vmatpush.msra.mxu0 %v103
    %267 = vmatpush.msra.mxu0 %v100
    %268 = vmatpush.msra.mxu0 %v97
    %269 = vmatpush.msra.mxu0 %v94
    %270 = vmatpush.msra.mxu0 %v91
    %271 = vmatpush.msra.mxu0 %v88
    %272 = vmatpush.msra.mxu0 %v85
    %273 = vmatpush.msra.mxu0 %v82
    %274 = vmatpush.msra.mxu0 %v79
    %275 = vmatpush.msra.mxu0 %v76
    %276 = vmatpush.msra.mxu0 %v73
    %277 = vmatpush.msra.mxu0 %v70
    %278 = vmatpush.msra.mxu0 %v67
    %279 = vmatpush.msra.mxu0 %v64
    %280 = vmatpush.msra.mxu0 %v61
    %281 = vmatmul.f32.gmra.mxu0 %v218
    %v282 = vpop.f32.mrf.mxu0
    %v283 = vadd.f32 0.0, %v282
    %284 = vdwg.mxu0
    %v285 = vadd.f32 %v222, %v243
    %v286 = vxor.u32 %v285, 2147483648
    %v287 = vmul.f32 %v286, 1.442695
    %v288 = vpow.pop %v287
    %v289 = vadd.f32 %v288, 1.0
    %v290 = vrcp.pop %v289
    %v291 = vmul.f32 %v289, %v290
    %v292 = vsub.f32 1.0, %v291
    %v293 = vmul.f32 %v290, %v292
    %v294 = vadd.f32 %v290, %v293
    %vm295 = vweird.f32 %v289
    %vm296 = vweird.f32 %v290
    %vm297 = vmor %vm295, %vm296
    %v298 = vsel %vm297, %v290, %v294
    %v299 = vand.u32 2147483647, %v289
    %vm300 = vcmp.eq.f32.partialorder %v299, 8.507059e+37
    %v301 = vand.u32 %v289, 2147483648
    %v302 = vor.u32 1.1754944e-38, %v301
    %v303 = vsel %vm300, %v302, %v298
    %v304 = vmul.f32 1.0, %v303
    %v305 = vadd.f32 %v223, %v263
    %v306 = vxor.u32 %v305, 2147483648
    %v307 = vmul.f32 %v306, 1.442695
    %v308 = vpow.pop %v307
    %v309 = vadd.f32 %v308, 1.0
    %v310 = vrcp.pop %v309
    %v311 = vmul.f32 %v309, %v310
    %v312 = vsub.f32 1.0, %v311
    %v313 = vmul.f32 %v310, %v312
    %v314 = vadd.f32 %v310, %v313
    %vm315 = vweird.f32 %v309
    %vm316 = vweird.f32 %v310
    %vm317 = vmor %vm315, %vm316
    %v318 = vsel %vm317, %v310, %v314
    %v319 = vand.u32 2147483647, %v309
    %vm320 = vcmp.eq.f32.partialorder %v319, 8.507059e+37
    %v321 = vand.u32 %v309, 2147483648
    %v322 = vor.u32 1.1754944e-38, %v321
    %v323 = vsel %vm320, %v322, %v318
    %v324 = vmul.f32 1.0, %v323
    %v325 = vadd.f32 %v283, %v209
    %v326 = vmul.f32 %v304, %v325
    %v327 = vadd.f32 %v224, %v326
    %v328 = vtanh.pop %v327
    %v329 = vsub.f32 1.0, %v324
    %v330 = vmul.f32 %v329, %v328
    %v331 = vmul.f32 %v324, %v218
    %v332 = vadd.f32 %v330, %v331
    %s333 = smul.u32 2, 3
    %s334 = smul.addr %s333, 8
    %s335 = scalar_lea.vmem [#allocation3], %s334
    %v336 = vld [vmem:[%s335] sm:$0xff]
    %v337 = vld [vmem:[%s335 + $0x8] sm:$0xff]
    %v338 = vld [vmem:[%s335 + $0x10] sm:$0xff]
    %339 = vmatpush.msra.mxu0 %v104
    %340 = vmatpush.msra.mxu0 %v101
    %341 = vmatpush.msra.mxu0 %v98
    %342 = vmatpush.msra.mxu0 %v95
    %343 = vmatpush.msra.mxu0 %v92
    %344 = vmatpush.msra.mxu0 %v89
    %345 = vmatpush.msra.mxu0 %v86
    %346 = vmatpush.msra.mxu0 %v83
    %347 = vmatpush.msra.mxu0 %v80
    %348 = vmatpush.msra.mxu0 %v77
    %349 = vmatpush.msra.mxu0 %v74
    %350 = vmatpush.msra.mxu0 %v71
    %351 = vmatpush.msra.mxu0 %v68
    %352 = vmatpush.msra.mxu0 %v65
    %353 = vmatpush.msra.mxu0 %v62
    %354 = vmatpush.msra.mxu0 %v59
    %355 = vmatmul.f32.gmra.mxu0 %v332
    %v356 = vpop.f32.mrf.mxu0
    %v357 = vadd.f32 0.0, %v356
    %358 = vdwg.mxu0
    %359 = vmatpush.msra.mxu0 %v105
    %360 = vmatpush.msra.mxu0 %v102
    %361 = vmatpush.msra.mxu0 %v99
    %362 = vmatpush.msra.mxu0 %v96
    %363 = vmatpush.msra.mxu0 %v93
    %364 = vmatpush.msra.mxu0 %v90
    %365 = vmatpush.msra.mxu0 %v87
    %366 = vmatpush.msra.mxu0 %v84
    %367 = vmatpush.msra.mxu0 %v81
    %368 = vmatpush.msra.mxu0 %v78
    %369 = vmatpush.msra.mxu0 %v75
    %370 = vmatpush.msra.mxu0 %v72
    %371 = vmatpush.msra.mxu0 %v69
    %372 = vmatpush.msra.mxu0 %v66
    %373 = vmatpush.msra.mxu0 %v63
    %374 = vmatpush.msra.mxu0 %v60
    %375 = vmatmul.f32.gmra.mxu0 %v332
    %v376 = vpop.f32.mrf.mxu0
    %v377 = vadd.f32 0.0, %v376
    %378 = vdwg.mxu0
    %379 = vmatpush.msra.mxu0 %v106
    %380 = vmatpush.msra.mxu0 %v103
    %381 = vmatpush.msra.mxu0 %v100
    %382 = vmatpush.msra.mxu0 %v97
    %383 = vmatpush.msra.mxu0 %v94
    %384 = vmatpush.msra.mxu0 %v91
    %385 = vmatpush.msra.mxu0 %v88
    %386 = vmatpush.msra.mxu0 %v85
    %387 = vmatpush.msra.mxu0 %v82
    %388 = vmatpush.msra.mxu0 %v79
    %389 = vmatpush.msra.mxu0 %v76
    %390 = vmatpush.msra.mxu0 %v73
    %391 = vmatpush.msra.mxu0 %v70
    %392 = vmatpush.msra.mxu0 %v67
    %393 = vmatpush.msra.mxu0 %v64
    %394 = vmatpush.msra.mxu0 %v61
    %395 = vmatmul.f32.gmra.mxu0 %v332
    %v396 = vpop.f32.mrf.mxu0
    %v397 = vadd.f32 0.0, %v396
    %398 = vdwg.mxu0
    %v399 = vadd.f32 %v336, %v357
    %v400 = vxor.u32 %v399, 2147483648
    %v401 = vmul.f32 %v400, 1.442695
    %v402 = vpow.pop %v401
    %v403 = vadd.f32 %v402, 1.0
    %v404 = vrcp.pop %v403
    %v405 = vmul.f32 %v403, %v404
    %v406 = vsub.f32 1.0, %v405
    %v407 = vmul.f32 %v404, %v406
    %v408 = vadd.f32 %v404, %v407
    %vm409 = vweird.f32 %v403
    %vm410 = vweird.f32 %v404
    %vm411 = vmor %vm409, %vm410
    %v412 = vsel %vm411, %v404, %v408
    %v413 = vand.u32 2147483647, %v403
    %vm414 = vcmp.eq.f32.partialorder %v413, 8.507059e+37
    %v415 = vand.u32 %v403, 2147483648
    %v416 = vor.u32 1.1754944e-38, %v415
    %v417 = vsel %vm414, %v416, %v412
    %v418 = vmul.f32 1.0, %v417
    %v419 = vadd.f32 %v337, %v377
    %v420 = vxor.u32 %v419, 2147483648
    %v421 = vmul.f32 %v420, 1.442695
    %v422 = vpow.pop %v421
    %v423 = vadd.f32 %v422, 1.0
    %v424 = vrcp.pop %v423
    %v425 = vmul.f32 %v423, %v424
    %v426 = vsub.f32 1.0, %v425
    %v427 = vmul.f32 %v424, %v426
    %v428 = vadd.f32 %v424, %v427
    %vm429 = vweird.f32 %v423
    %vm430 = vweird.f32 %v424
    %vm431 = vmor %vm429, %vm430
    %v432 = vsel %vm431, %v424, %v428
    %v433 = vand.u32 2147483647, %v423
    %vm434 = vcmp.eq.f32.partialorder %v433, 8.507059e+37
    %v435 = vand.u32 %v423, 2147483648
    %v436 = vor.u32 1.1754944e-38, %v435
    %v437 = vsel %vm434, %v436, %v432
    %v438 = vmul.f32 1.0, %v437
    %v439 = vadd.f32 %v397, %v209
    %v440 = vmul.f32 %v418, %v439
    %v441 = vadd.f32 %v338, %v440
    %v442 = vtanh.pop %v441
    %v443 = vsub.f32 1.0, %v438
    %v444 = vmul.f32 %v443, %v442
    %v445 = vmul.f32 %v438, %v332
    %v446 = vadd.f32 %v444, %v445
    %s447 = smul.u32 3, 3
    %s448 = smul.addr %s447, 8
    %s449 = scalar_lea.vmem [#allocation3], %s448
    %v450 = vld [vmem:[%s449] sm:$0xff]
    %v451 = vld [vmem:[%s449 + $0x8] sm:$0xff]
    %v452 = vld [vmem:[%s449 + $0x10] sm:$0xff]
    %453 = vmatpush.msra.mxu0 %v104
    %454 = vmatpush.msra.mxu0 %v101
    %455 = vmatpush.msra.mxu0 %v98
    %456 = vmatpush.msra.mxu0 %v95
    %457 = vmatpush.msra.mxu0 %v92
    %458 = vmatpush.msra.mxu0 %v89
    %459 = vmatpush.msra.mxu0 %v86
    %460 = vmatpush.msra.mxu0 %v83
    %461 = vmatpush.msra.mxu0 %v80
    %462 = vmatpush.msra.mxu0 %v77
    %463 = vmatpush.msra.mxu0 %v74
    %464 = vmatpush.msra.mxu0 %v71
    %465 = vmatpush.msra.mxu0 %v68
    %466 = vmatpush.msra.mxu0 %v65
    %467 = vmatpush.msra.mxu0 %v62
    %468 = vmatpush.msra.mxu0 %v59
    %469 = vmatmul.f32.gmra.mxu0 %v446
    %v470 = vpop.f32.mrf.mxu0
    %v471 = vadd.f32 0.0, %v470
    %472 = vdwg.mxu0
    %473 = vmatpush.msra.mxu0 %v105
    %474 = vmatpush.msra.mxu0 %v102
    %475 = vmatpush.msra.mxu0 %v99
    %476 = vmatpush.msra.mxu0 %v96
    %477 = vmatpush.msra.mxu0 %v93
    %478 = vmatpush.msra.mxu0 %v90
    %479 = vmatpush.msra.mxu0 %v87
    %480 = vmatpush.msra.mxu0 %v84
    %481 = vmatpush.msra.mxu0 %v81
    %482 = vmatpush.msra.mxu0 %v78
    %483 = vmatpush.msra.mxu0 %v75
    %484 = vmatpush.msra.mxu0 %v72
    %485 = vmatpush.msra.mxu0 %v69
    %486 = vmatpush.msra.mxu0 %v66
    %487 = vmatpush.msra.mxu0 %v63
    %488 = vmatpush.msra.mxu0 %v60
    %489 = vmatmul.f32.gmra.mxu0 %v446
    %v490 = vpop.f32.mrf.mxu0
    %v491 = vadd.f32 0.0, %v490
    %492 = vdwg.mxu0
    %493 = vmatpush.msra.mxu0 %v106
    %494 = vmatpush.msra.mxu0 %v103
    %495 = vmatpush.msra.mxu0 %v100
    %496 = vmatpush.msra.mxu0 %v97
    %497 = vmatpush.msra.mxu0 %v94
    %498 = vmatpush.msra.mxu0 %v91
    %499 = vmatpush.msra.mxu0 %v88
    %500 = vmatpush.msra.mxu0 %v85
    %501 = vmatpush.msra.mxu0 %v82
    %502 = vmatpush.msra.mxu0 %v79
    %503 = vmatpush.msra.mxu0 %v76
    %504 = vmatpush.msra.mxu0 %v73
    %505 = vmatpush.msra.mxu0 %v70
    %506 = vmatpush.msra.mxu0 %v67
    %507 = vmatpush.msra.mxu0 %v64
    %508 = vmatpush.msra.mxu0 %v61
    %509 = vmatmul.f32.gmra.mxu0 %v446
    %v510 = vpop.f32.mrf.mxu0
    %v511 = vadd.f32 0.0, %v510
    %512 = vdwg.mxu0
    %v513 = vadd.f32 %v450, %v471
    %v514 = vxor.u32 %v513, 2147483648
    %v515 = vmul.f32 %v514, 1.442695
    %v516 = vpow.pop %v515
    %v517 = vadd.f32 %v516, 1.0
    %v518 = vrcp.pop %v517
    %v519 = vmul.f32 %v517, %v518
    %v520 = vsub.f32 1.0, %v519
    %v521 = vmul.f32 %v518, %v520
    %v522 = vadd.f32 %v518, %v521
    %vm523 = vweird.f32 %v517
    %vm524 = vweird.f32 %v518
    %vm525 = vmor %vm523, %vm524
    %v526 = vsel %vm525, %v518, %v522
    %v527 = vand.u32 2147483647, %v517
    %vm528 = vcmp.eq.f32.partialorder %v527, 8.507059e+37
    %v529 = vand.u32 %v517, 2147483648
    %v530 = vor.u32 1.1754944e-38, %v529
    %v531 = vsel %vm528, %v530, %v526
    %v532 = vmul.f32 1.0, %v531
    %v533 = vadd.f32 %v451, %v491
    %v534 = vxor.u32 %v533, 2147483648
    %v535 = vmul.f32 %v534, 1.442695
    %v536 = vpow.pop %v535
    %v537 = vadd.f32 %v536, 1.0
    %v538 = vrcp.pop %v537
    %v539 = vmul.f32 %v537, %v538
    %v540 = vsub.f32 1.0, %v539
    %v541 = vmul.f32 %v538, %v540
    %v542 = vadd.f32 %v538, %v541
    %vm543 = vweird.f32 %v537
    %vm544 = vweird.f32 %v538
    %vm545 = vmor %vm543, %vm544
    %v546 = vsel %vm545, %v538, %v542
    %v547 = vand.u32 2147483647, %v537
    %vm548 = vcmp.eq.f32.partialorder %v547, 8.507059e+37
    %v549 = vand.u32 %v537, 2147483648
    %v550 = vor.u32 1.1754944e-38, %v549
    %v551 = vsel %vm548, %v550, %v546
    %v552 = vmul.f32 1.0, %v551
    %v553 = vadd.f32 %v511, %v209
    %v554 = vmul.f32 %v532, %v553
    %v555 = vadd.f32 %v452, %v554
    %v556 = vtanh.pop %v555
    %v557 = vsub.f32 1.0, %v552
    %v558 = vmul.f32 %v557, %v556
    %v559 = vmul.f32 %v552, %v446
    %v560 = vadd.f32 %v558, %v559
    %s561 = smul.u32 4, 3
    %s562 = smul.addr %s561, 8
    %s563 = scalar_lea.vmem [#allocation3], %s562
    %v564 = vld [vmem:[%s563] sm:$0xff]
    %v565 = vld [vmem:[%s563 + $0x8] sm:$0xff]
    %v566 = vld [vmem:[%s563 + $0x10] sm:$0xff]
    %567 = vmatpush.msra.mxu0 %v104
    %568 = vmatpush.msra.mxu0 %v101
    %569 = vmatpush.msra.mxu0 %v98
    %570 = vmatpush.msra.mxu0 %v95
    %571 = vmatpush.msra.mxu0 %v92
    %572 = vmatpush.msra.mxu0 %v89
    %573 = vmatpush.msra.mxu0 %v86
    %574 = vmatpush.msra.mxu0 %v83
    %575 = vmatpush.msra.mxu0 %v80
    %576 = vmatpush.msra.mxu0 %v77
    %577 = vmatpush.msra.mxu0 %v74
    %578 = vmatpush.msra.mxu0 %v71
    %579 = vmatpush.msra.mxu0 %v68
    %580 = vmatpush.msra.mxu0 %v65
    %581 = vmatpush.msra.mxu0 %v62
    %582 = vmatpush.msra.mxu0 %v59
    %583 = vmatmul.f32.gmra.mxu0 %v560
    %v584 = vpop.f32.mrf.mxu0
    %v585 = vadd.f32 0.0, %v584
    %586 = vdwg.mxu0
    %587 = vmatpush.msra.mxu0 %v105
    %588 = vmatpush.msra.mxu0 %v102
    %589 = vmatpush.msra.mxu0 %v99
    %590 = vmatpush.msra.mxu0 %v96
    %591 = vmatpush.msra.mxu0 %v93
    %592 = vmatpush.msra.mxu0 %v90
    %593 = vmatpush.msra.mxu0 %v87
    %594 = vmatpush.msra.mxu0 %v84
    %595 = vmatpush.msra.mxu0 %v81
    %596 = vmatpush.msra.mxu0 %v78
    %597 = vmatpush.msra.mxu0 %v75
    %598 = vmatpush.msra.mxu0 %v72
    %599 = vmatpush.msra.mxu0 %v69
    %600 = vmatpush.msra.mxu0 %v66
    %601 = vmatpush.msra.mxu0 %v63
    %602 = vmatpush.msra.mxu0 %v60
    %603 = vmatmul.f32.gmra.mxu0 %v560
    %v604 = vpop.f32.mrf.mxu0
    %v605 = vadd.f32 0.0, %v604
    %606 = vdwg.mxu0
    %607 = vmatpush.msra.mxu0 %v106
    %608 = vmatpush.msra.mxu0 %v103
    %609 = vmatpush.msra.mxu0 %v100
    %610 = vmatpush.msra.mxu0 %v97
    %611 = vmatpush.msra.mxu0 %v94
    %612 = vmatpush.msra.mxu0 %v91
    %613 = vmatpush.msra.mxu0 %v88
    %614 = vmatpush.msra.mxu0 %v85
    %615 = vmatpush.msra.mxu0 %v82
    %616 = vmatpush.msra.mxu0 %v79
    %617 = vmatpush.msra.mxu0 %v76
    %618 = vmatpush.msra.mxu0 %v73
    %619 = vmatpush.msra.mxu0 %v70
    %620 = vmatpush.msra.mxu0 %v67
    %621 = vmatpush.msra.mxu0 %v64
    %622 = vmatpush.msra.mxu0 %v61
    %623 = vmatmul.f32.gmra.mxu0 %v560
    %v624 = vpop.f32.mrf.mxu0
    %v625 = vadd.f32 0.0, %v624
    %626 = vdwg.mxu0
    %v627 = vadd.f32 %v564, %v585
    %v628 = vxor.u32 %v627, 2147483648
    %v629 = vmul.f32 %v628, 1.442695
    %v630 = vpow.pop %v629
    %v631 = vadd.f32 %v630, 1.0
    %v632 = vrcp.pop %v631
    %v633 = vmul.f32 %v631, %v632
    %v634 = vsub.f32 1.0, %v633
    %v635 = vmul.f32 %v632, %v634
    %v636 = vadd.f32 %v632, %v635
    %vm637 = vweird.f32 %v631
    %vm638 = vweird.f32 %v632
    %vm639 = vmor %vm637, %vm638
    %v640 = vsel %vm639, %v632, %v636
    %v641 = vand.u32 2147483647, %v631
    %vm642 = vcmp.eq.f32.partialorder %v641, 8.507059e+37
    %v643 = vand.u32 %v631, 2147483648
    %v644 = vor.u32 1.1754944e-38, %v643
    %v645 = vsel %vm642, %v644, %v640
    %v646 = vmul.f32 1.0, %v645
    %v647 = vadd.f32 %v565, %v605
    %v648 = vxor.u32 %v647, 2147483648
    %v649 = vmul.f32 %v648, 1.442695
    %v650 = vpow.pop %v649
    %v651 = vadd.f32 %v650, 1.0
    %v652 = vrcp.pop %v651
    %v653 = vmul.f32 %v651, %v652
    %v654 = vsub.f32 1.0, %v653
    %v655 = vmul.f32 %v652, %v654
    %v656 = vadd.f32 %v652, %v655
    %vm657 = vweird.f32 %v651
    %vm658 = vweird.f32 %v652
    %vm659 = vmor %vm657, %vm658
    %v660 = vsel %vm659, %v652, %v656
    %v661 = vand.u32 2147483647, %v651
    %vm662 = vcmp.eq.f32.partialorder %v661, 8.507059e+37
    %v663 = vand.u32 %v651, 2147483648
    %v664 = vor.u32 1.1754944e-38, %v663
    %v665 = vsel %vm662, %v664, %v660
    %v666 = vmul.f32 1.0, %v665
    %v667 = vadd.f32 %v625, %v209
    %v668 = vmul.f32 %v646, %v667
    %v669 = vadd.f32 %v566, %v668
    %v670 = vtanh.pop %v669
    %v671 = vsub.f32 1.0, %v666
    %v672 = vmul.f32 %v671, %v670
    %v673 = vmul.f32 %v666, %v560
    %v674 = vadd.f32 %v672, %v673
    %s675 = smul.u32 5, 3
    %s676 = smul.addr %s675, 8
    %s677 = scalar_lea.vmem [#allocation3], %s676
    %v678 = vld [vmem:[%s677] sm:$0xff]
    %v679 = vld [vmem:[%s677 + $0x8] sm:$0xff]
    %v680 = vld [vmem:[%s677 + $0x10] sm:$0xff]
    %681 = vmatpush.msra.mxu0 %v104
    %682 = vmatpush.msra.mxu0 %v101
    %683 = vmatpush.msra.mxu0 %v98
    %684 = vmatpush.msra.mxu0 %v95
    %685 = vmatpush.msra.mxu0 %v92
    %686 = vmatpush.msra.mxu0 %v89
    %687 = vmatpush.msra.mxu0 %v86
    %688 = vmatpush.msra.mxu0 %v83
    %689 = vmatpush.msra.mxu0 %v80
    %690 = vmatpush.msra.mxu0 %v77
    %691 = vmatpush.msra.mxu0 %v74
    %692 = vmatpush.msra.mxu0 %v71
    %693 = vmatpush.msra.mxu0 %v68
    %694 = vmatpush.msra.mxu0 %v65
    %695 = vmatpush.msra.mxu0 %v62
    %696 = vmatpush.msra.mxu0 %v59
    %697 = vmatmul.f32.gmra.mxu0 %v674
    %v698 = vpop.f32.mrf.mxu0
    %v699 = vadd.f32 0.0, %v698
    %700 = vdwg.mxu0
    %701 = vmatpush.msra.mxu0 %v105
    %702 = vmatpush.msra.mxu0 %v102
    %703 = vmatpush.msra.mxu0 %v99
    %704 = vmatpush.msra.mxu0 %v96
    %705 = vmatpush.msra.mxu0 %v93
    %706 = vmatpush.msra.mxu0 %v90
    %707 = vmatpush.msra.mxu0 %v87
    %708 = vmatpush.msra.mxu0 %v84
    %709 = vmatpush.msra.mxu0 %v81
    %710 = vmatpush.msra.mxu0 %v78
    %711 = vmatpush.msra.mxu0 %v75
    %712 = vmatpush.msra.mxu0 %v72
    %713 = vmatpush.msra.mxu0 %v69
    %714 = vmatpush.msra.mxu0 %v66
    %715 = vmatpush.msra.mxu0 %v63
    %716 = vmatpush.msra.mxu0 %v60
    %717 = vmatmul.f32.gmra.mxu0 %v674
    %v718 = vpop.f32.mrf.mxu0
    %v719 = vadd.f32 0.0, %v718
    %720 = vdwg.mxu0
    %721 = vmatpush.msra.mxu0 %v106
    %722 = vmatpush.msra.mxu0 %v103
    %723 = vmatpush.msra.mxu0 %v100
    %724 = vmatpush.msra.mxu0 %v97
    %725 = vmatpush.msra.mxu0 %v94
    %726 = vmatpush.msra.mxu0 %v91
    %727 = vmatpush.msra.mxu0 %v88
    %728 = vmatpush.msra.mxu0 %v85
    %729 = vmatpush.msra.mxu0 %v82
    %730 = vmatpush.msra.mxu0 %v79
    %731 = vmatpush.msra.mxu0 %v76
    %732 = vmatpush.msra.mxu0 %v73
    %733 = vmatpush.msra.mxu0 %v70
    %734 = vmatpush.msra.mxu0 %v67
    %735 = vmatpush.msra.mxu0 %v64
    %736 = vmatpush.msra.mxu0 %v61
    %737 = vmatmul.f32.gmra.mxu0 %v674
    %v738 = vpop.f32.mrf.mxu0
    %v739 = vadd.f32 0.0, %v738
    %740 = vdwg.mxu0
    %v741 = vadd.f32 %v678, %v699
    %v742 = vxor.u32 %v741, 2147483648
    %v743 = vmul.f32 %v742, 1.442695
    %v744 = vpow.pop %v743
    %v745 = vadd.f32 %v744, 1.0
    %v746 = vrcp.pop %v745
    %v747 = vmul.f32 %v745, %v746
    %v748 = vsub.f32 1.0, %v747
    %v749 = vmul.f32 %v746, %v748
    %v750 = vadd.f32 %v746, %v749
    %vm751 = vweird.f32 %v745
    %vm752 = vweird.f32 %v746
    %vm753 = vmor %vm751, %vm752
    %v754 = vsel %vm753, %v746, %v750
    %v755 = vand.u32 2147483647, %v745
    %vm756 = vcmp.eq.f32.partialorder %v755, 8.507059e+37
    %v757 = vand.u32 %v745, 2147483648
    %v758 = vor.u32 1.1754944e-38, %v757
    %v759 = vsel %vm756, %v758, %v754
    %v760 = vmul.f32 1.0, %v759
    %v761 = vadd.f32 %v679, %v719
    %v762 = vxor.u32 %v761, 2147483648
    %v763 = vmul.f32 %v762, 1.442695
    %v764 = vpow.pop %v763
    %v765 = vadd.f32 %v764, 1.0
    %v766 = vrcp.pop %v765
    %v767 = vmul.f32 %v765, %v766
    %v768 = vsub.f32 1.0, %v767
    %v769 = vmul.f32 %v766, %v768
    %v770 = vadd.f32 %v766, %v769
    %vm771 = vweird.f32 %v765
    %vm772 = vweird.f32 %v766
    %vm773 = vmor %vm771, %vm772
    %v774 = vsel %vm773, %v766, %v770
    %v775 = vand.u32 2147483647, %v765
    %vm776 = vcmp.eq.f32.partialorder %v775, 8.507059e+37
    %v777 = vand.u32 %v765, 2147483648
    %v778 = vor.u32 1.1754944e-38, %v777
    %v779 = vsel %vm776, %v778, %v774
    %v780 = vmul.f32 1.0, %v779
    %v781 = vadd.f32 %v739, %v209
    %v782 = vmul.f32 %v760, %v781
    %v783 = vadd.f32 %v680, %v782
    %v784 = vtanh.pop %v783
    %v785 = vsub.f32 1.0, %v780
    %v786 = vmul.f32 %v785, %v784
    %v787 = vmul.f32 %v780, %v674
    %v788 = vadd.f32 %v786, %v787
    %s789 = smul.u32 6, 3
    %s790 = smul.addr %s789, 8
    %s791 = scalar_lea.vmem [#allocation3], %s790
    %v792 = vld [vmem:[%s791] sm:$0xff]
    %v793 = vld [vmem:[%s791 + $0x8] sm:$0xff]
    %v794 = vld [vmem:[%s791 + $0x10] sm:$0xff]
    %795 = vmatpush.msra.mxu0 %v104
    %796 = vmatpush.msra.mxu0 %v101
    %797 = vmatpush.msra.mxu0 %v98
    %798 = vmatpush.msra.mxu0 %v95
    %799 = vmatpush.msra.mxu0 %v92
    %800 = vmatpush.msra.mxu0 %v89
    %801 = vmatpush.msra.mxu0 %v86
    %802 = vmatpush.msra.mxu0 %v83
    %803 = vmatpush.msra.mxu0 %v80
    %804 = vmatpush.msra.mxu0 %v77
    %805 = vmatpush.msra.mxu0 %v74
    %806 = vmatpush.msra.mxu0 %v71
    %807 = vmatpush.msra.mxu0 %v68
    %808 = vmatpush.msra.mxu0 %v65
    %809 = vmatpush.msra.mxu0 %v62
    %810 = vmatpush.msra.mxu0 %v59
    %811 = vmatmul.f32.gmra.mxu0 %v788
    %v812 = vpop.f32.mrf.mxu0
    %v813 = vadd.f32 0.0, %v812
    %814 = vdwg.mxu0
    %815 = vmatpush.msra.mxu0 %v105
    %816 = vmatpush.msra.mxu0 %v102
    %817 = vmatpush.msra.mxu0 %v99
    %818 = vmatpush.msra.mxu0 %v96
    %819 = vmatpush.msra.mxu0 %v93
    %820 = vmatpush.msra.mxu0 %v90
    %821 = vmatpush.msra.mxu0 %v87
    %822 = vmatpush.msra.mxu0 %v84
    %823 = vmatpush.msra.mxu0 %v81
    %824 = vmatpush.msra.mxu0 %v78
    %825 = vmatpush.msra.mxu0 %v75
    %826 = vmatpush.msra.mxu0 %v72
    %827 = vmatpush.msra.mxu0 %v69
    %828 = vmatpush.msra.mxu0 %v66
    %829 = vmatpush.msra.mxu0 %v63
    %830 = vmatpush.msra.mxu0 %v60
    %831 = vmatmul.f32.gmra.mxu0 %v788
    %v832 = vpop.f32.mrf.mxu0
    %v833 = vadd.f32 0.0, %v832
    %834 = vdwg.mxu0
    %835 = vmatpush.msra.mxu0 %v106
    %836 = vmatpush.msra.mxu0 %v103
    %837 = vmatpush.msra.mxu0 %v100
    %838 = vmatpush.msra.mxu0 %v97
    %839 = vmatpush.msra.mxu0 %v94
    %840 = vmatpush.msra.mxu0 %v91
    %841 = vmatpush.msra.mxu0 %v88
    %842 = vmatpush.msra.mxu0 %v85
    %843 = vmatpush.msra.mxu0 %v82
    %844 = vmatpush.msra.mxu0 %v79
    %845 = vmatpush.msra.mxu0 %v76
    %846 = vmatpush.msra.mxu0 %v73
    %847 = vmatpush.msra.mxu0 %v70
    %848 = vmatpush.msra.mxu0 %v67
    %849 = vmatpush.msra.mxu0 %v64
    %850 = vmatpush.msra.mxu0 %v61
    %851 = vmatmul.f32.gmra.mxu0 %v788
    %v852 = vpop.f32.mrf.mxu0
    %v853 = vadd.f32 0.0, %v852
    %854 = vdwg.mxu0
    %v855 = vadd.f32 %v792, %v813
    %v856 = vxor.u32 %v855, 2147483648
    %v857 = vmul.f32 %v856, 1.442695
    %v858 = vpow.pop %v857
    %v859 = vadd.f32 %v858, 1.0
    %v860 = vrcp.pop %v859
    %v861 = vmul.f32 %v859, %v860
    %v862 = vsub.f32 1.0, %v861
    %v863 = vmul.f32 %v860, %v862
    %v864 = vadd.f32 %v860, %v863
    %vm865 = vweird.f32 %v859
    %vm866 = vweird.f32 %v860
    %vm867 = vmor %vm865, %vm866
    %v868 = vsel %vm867, %v860, %v864
    %v869 = vand.u32 2147483647, %v859
    %vm870 = vcmp.eq.f32.partialorder %v869, 8.507059e+37
    %v871 = vand.u32 %v859, 2147483648
    %v872 = vor.u32 1.1754944e-38, %v871
    %v873 = vsel %vm870, %v872, %v868
    %v874 = vmul.f32 1.0, %v873
    %v875 = vadd.f32 %v793, %v833
    %v876 = vxor.u32 %v875, 2147483648
    %v877 = vmul.f32 %v876, 1.442695
    %v878 = vpow.pop %v877
    %v879 = vadd.f32 %v878, 1.0
    %v880 = vrcp.pop %v879
    %v881 = vmul.f32 %v879, %v880
    %v882 = vsub.f32 1.0, %v881
    %v883 = vmul.f32 %v880, %v882
    %v884 = vadd.f32 %v880, %v883
    %vm885 = vweird.f32 %v879
    %vm886 = vweird.f32 %v880
    %vm887 = vmor %vm885, %vm886
    %v888 = vsel %vm887, %v880, %v884
    %v889 = vand.u32 2147483647, %v879
    %vm890 = vcmp.eq.f32.partialorder %v889, 8.507059e+37
    %v891 = vand.u32 %v879, 2147483648
    %v892 = vor.u32 1.1754944e-38, %v891
    %v893 = vsel %vm890, %v892, %v888
    %v894 = vmul.f32 1.0, %v893
    %v895 = vadd.f32 %v853, %v209
    %v896 = vmul.f32 %v874, %v895
    %v897 = vadd.f32 %v794, %v896
    %v898 = vtanh.pop %v897
    %v899 = vsub.f32 1.0, %v894
    %v900 = vmul.f32 %v899, %v898
    %v901 = vmul.f32 %v894, %v788
    %v902 = vadd.f32 %v900, %v901
    %s903 = smul.u32 7, 3
    %s904 = smul.addr %s903, 8
    %s905 = scalar_lea.vmem [#allocation3], %s904
    %v906 = vld [vmem:[%s905] sm:$0xff]
    %v907 = vld [vmem:[%s905 + $0x8] sm:$0xff]
    %v908 = vld [vmem:[%s905 + $0x10] sm:$0xff]
    %909 = vmatpush.msra.mxu0 %v104
    %910 = vmatpush.msra.mxu0 %v101
    %911 = vmatpush.msra.mxu0 %v98
    %912 = vmatpush.msra.mxu0 %v95
    %913 = vmatpush.msra.mxu0 %v92
    %914 = vmatpush.msra.mxu0 %v89
    %915 = vmatpush.msra.mxu0 %v86
    %916 = vmatpush.msra.mxu0 %v83
    %917 = vmatpush.msra.mxu0 %v80
    %918 = vmatpush.msra.mxu0 %v77
    %919 = vmatpush.msra.mxu0 %v74
    %920 = vmatpush.msra.mxu0 %v71
    %921 = vmatpush.msra.mxu0 %v68
    %922 = vmatpush.msra.mxu0 %v65
    %923 = vmatpush.msra.mxu0 %v62
    %924 = vmatpush.msra.mxu0 %v59
    %925 = vmatmul.f32.gmra.mxu0 %v902
    %v926 = vpop.f32.mrf.mxu0
    %v927 = vadd.f32 0.0, %v926
    %928 = vdwg.mxu0
    %929 = vmatpush.msra.mxu0 %v105
    %930 = vmatpush.msra.mxu0 %v102
    %931 = vmatpush.msra.mxu0 %v99
    %932 = vmatpush.msra.mxu0 %v96
    %933 = vmatpush.msra.mxu0 %v93
    %934 = vmatpush.msra.mxu0 %v90
    %935 = vmatpush.msra.mxu0 %v87
    %936 = vmatpush.msra.mxu0 %v84
    %937 = vmatpush.msra.mxu0 %v81
    %938 = vmatpush.msra.mxu0 %v78
    %939 = vmatpush.msra.mxu0 %v75
    %940 = vmatpush.msra.mxu0 %v72
    %941 = vmatpush.msra.mxu0 %v69
    %942 = vmatpush.msra.mxu0 %v66
    %943 = vmatpush.msra.mxu0 %v63
    %944 = vmatpush.msra.mxu0 %v60
    %945 = vmatmul.f32.gmra.mxu0 %v902
    %v946 = vpop.f32.mrf.mxu0
    %v947 = vadd.f32 0.0, %v946
    %948 = vdwg.mxu0
    %949 = vmatpush.msra.mxu0 %v106
    %950 = vmatpush.msra.mxu0 %v103
    %951 = vmatpush.msra.mxu0 %v100
    %952 = vmatpush.msra.mxu0 %v97
    %953 = vmatpush.msra.mxu0 %v94
    %954 = vmatpush.msra.mxu0 %v91
    %955 = vmatpush.msra.mxu0 %v88
    %956 = vmatpush.msra.mxu0 %v85
    %957 = vmatpush.msra.mxu0 %v82
    %958 = vmatpush.msra.mxu0 %v79
    %959 = vmatpush.msra.mxu0 %v76
    %960 = vmatpush.msra.mxu0 %v73
    %961 = vmatpush.msra.mxu0 %v70
    %962 = vmatpush.msra.mxu0 %v67
    %963 = vmatpush.msra.mxu0 %v64
    %964 = vmatpush.msra.mxu0 %v61
    %965 = vmatmul.f32.gmra.mxu0 %v902
    %v966 = vpop.f32.mrf.mxu0
    %v967 = vadd.f32 0.0, %v966
    %968 = vdwg.mxu0
    %v969 = vadd.f32 %v906, %v927
    %v970 = vxor.u32 %v969, 2147483648
    %v971 = vmul.f32 %v970, 1.442695
    %v972 = vpow.pop %v971
    %v973 = vadd.f32 %v972, 1.0
    %v974 = vrcp.pop %v973
    %v975 = vmul.f32 %v973, %v974
    %v976 = vsub.f32 1.0, %v975
    %v977 = vmul.f32 %v974, %v976
    %v978 = vadd.f32 %v974, %v977
    %vm979 = vweird.f32 %v973
    %vm980 = vweird.f32 %v974
    %vm981 = vmor %vm979, %vm980
    %v982 = vsel %vm981, %v974, %v978
    %v983 = vand.u32 2147483647, %v973
    %vm984 = vcmp.eq.f32.partialorder %v983, 8.507059e+37
    %v985 = vand.u32 %v973, 2147483648
    %v986 = vor.u32 1.1754944e-38, %v985
    %v987 = vsel %vm984, %v986, %v982
    %v988 = vmul.f32 1.0, %v987
    %v989 = vadd.f32 %v907, %v947
    %v990 = vxor.u32 %v989, 2147483648
    %v991 = vmul.f32 %v990, 1.442695
    %v992 = vpow.pop %v991
    %v993 = vadd.f32 %v992, 1.0
    %v994 = vrcp.pop %v993
    %v995 = vmul.f32 %v993, %v994
    %v996 = vsub.f32 1.0, %v995
    %v997 = vmul.f32 %v994, %v996
    %v998 = vadd.f32 %v994, %v997
    %vm999 = vweird.f32 %v993
    %vm1000 = vweird.f32 %v994
    %vm1001 = vmor %vm999, %vm1000
    %v1002 = vsel %vm1001, %v994, %v998
    %v1003 = vand.u32 2147483647, %v993
    %vm1004 = vcmp.eq.f32.partialorder %v1003, 8.507059e+37
    %v1005 = vand.u32 %v993, 2147483648
    %v1006 = vor.u32 1.1754944e-38, %v1005
    %v1007 = vsel %vm1004, %v1006, %v1002
    %v1008 = vmul.f32 1.0, %v1007
    %v1009 = vadd.f32 %v967, %v209
    %v1010 = vmul.f32 %v988, %v1009
    %v1011 = vadd.f32 %v908, %v1010
    %v1012 = vtanh.pop %v1011
    %v1013 = vsub.f32 1.0, %v1008
    %v1014 = vmul.f32 %v1013, %v1012
    %v1015 = vmul.f32 %v1008, %v902
    %v1016 = vadd.f32 %v1014, %v1015
    %1017 = vst [vmem:[#allocation2] sm:$0xff] %v1016
    %1018 = vst [vmem:[#allocation8] sm:$0xff] %v1016
    // Predicated region
    $region26: #{tpu_custom_call.1} parent=1 // pred_check
      _
    $region27: #{tpu_custom_call.1} parent=1 // pred_check_branch
      %1020 = sbr.rel (0) target = $region29
    $region28: #{tpu_custom_call.1} parent=1 // pred_region
      %1022 = vsyncadd [#allocation5], 0
      %s1024 = sshll.u32 [#allocation8], 4
      %s1025 = int_to_ptr.vmem [resolvable:$true] %s1024
      %s1026 = sshll.u32 %s3, 4
      %s1027 = int_to_ptr.hbm [resolvable:$true] %s1026
      %1029 = dma.vmem_to_hbm [thread:$0]  %s1025, 128, %s1027, [#allocation5]
    $region29: #{tpu_custom_call.1} parent=1 // pred_fallthru
      _
    // Predicated region
    $region30: #{tpu_custom_call.1} parent=1 // pred_check
      _
    $region31: #{tpu_custom_call.1} parent=1 // pred_check_branch
      %1031 = sbr.rel (0) target = $region33
    $region32: #{tpu_custom_call.1} parent=1 // pred_region
      %1033 = dma.done [#allocation5], 128
    $region33: #{tpu_custom_call.1} parent=1 // pred_fallthru
      _
    %1034 = vsyncpa [#allocation4], 1
    %1035 = vsyncpa [#allocation7], 1
    %1036 = vsyncpa [#allocation5], 1

</llo_original>
